<compile_context>
chip_gen: v7x
topology: tpu7x:2x2x1
jax: 0.10.0
libtpu: 0.0.40
codegen_flags: <defaults>
</compile_context>

<pallas_src>
import functools

import jax
import jax.numpy as jnp
from jax import lax
from jax.experimental import pallas as pl
from jax.experimental.pallas import tpu as pltpu


def convtrans_bn_relu_kernel(x_ref, w_ref, gamma_ref, beta_ref, o_ref, *, H, W, D, eps):
    """Single grid step over the whole batch.

    x_ref:     (N, H+D-1, W+D-1, Cin)  bf16, NHWC input with a zero halo
    w_ref:     (P*Cout, D*D*Cin)       bf16, merged per-phase taps (P = stride*stride)
    gamma_ref: (Cout, 1)               f32, BatchNorm weight
    beta_ref:  (Cout, 1)               f32, BatchNorm bias
    o_ref:     (P, Cout, N*H*W)        per-phase, channel-major output (lane-dense)
    """
    N = x_ref.shape[0]
    Cin = x_ref.shape[-1]
    P, Cout, R = o_ref.shape            # R == N*H*W

    xv = x_ref[...]                     # (N, H+D-1, W+D-1, Cin) bf16

    # --- im2col over the DxD (=2x2) window shared by all phases ---
    cols = []
    for jh in range(D):
        for jw in range(D):
            cols.append(xv[:, jh:jh + H, jw:jw + W, :].reshape(R, Cin))
    patch = jnp.concatenate(cols, axis=-1)                       # (R, D*D*Cin) bf16

    # --- conv: ONE MXU contraction producing all phases, channel-major ---
    # acc[p*Cout+o, r] = sum_k w[p*Cout+o, k] * patch[r, k]   (f32 accumulation)
    acc = lax.dot_general(w_ref[...], patch,
                          (((1,), (1,)), ((), ())),
                          preferred_element_type=jnp.float32)    # (P*Cout, R) f32
    acc = acc.reshape(P, Cout, R)

    # --- BatchNorm: one-pass batch stats over all N*Ho*Wo = P*R positions ---
    inv_m = 1.0 / (P * R)
    s1 = jnp.sum(jnp.sum(acc, axis=2, keepdims=True), axis=0, keepdims=True)        # (1,Cout,1)
    s2 = jnp.sum(jnp.sum(acc * acc, axis=2, keepdims=True), axis=0, keepdims=True)  # (1,Cout,1)
    mean = s1 * inv_m
    var = s2 * inv_m - mean * mean                               # biased variance (PyTorch)
    scale = gamma_ref[...].reshape(1, Cout, 1) * lax.rsqrt(var + eps)
    shift = beta_ref[...].reshape(1, Cout, 1) - mean * scale

    # --- fused affine + ReLU, lane-dense store ---
    o_ref[...] = jnp.maximum(acc * scale + shift, 0.0).astype(o_ref.dtype)


def convtrans_bn_relu(x_nchw, weight_iohw, gamma, beta, *,
                      stride=2, pad=1, output_pad=1, eps=1e-5):
    """Matches F.relu(BatchNorm2d(Cout)(ConvTranspose2d(..., bias=False)(x))) with the
    BatchNorm in its default training-mode forward (batch statistics)."""
    N, Cin, H, W = x_nchw.shape
    Cin_w, Cout, KH, KW = weight_iohw.shape
    assert Cin_w == Cin and KH == KW
    # PyTorch rejects output_padding >= stride at forward time (so the class defaults
    # stride=1/output_pad=1 are unusable); the canonical valid config is this stride=2
    # upsampling block.
    assert 0 <= output_pad < stride, "PyTorch requires output_padding < stride"

    Ho = (H - 1) * stride - 2 * pad + KH + output_pad
    Wo = (W - 1) * stride - 2 * pad + KW + output_pad
    # Phase decomposition used here requires the stride x stride phase grid to exactly
    # tile the output (true for k=3, stride=2, pad=1, output_pad=1).
    assert Ho == stride * H and Wo == stride * W, "unsupported geometry for phase decomposition"

    # per-phase taps: output row oh = stride*a + p uses kernel rows k with
    # k == p + pad (mod stride), reading input row a + d where d = (p + pad - k)//stride
    taps = []
    for p in range(stride):
        taps.append([((p + pad - k) // stride, k)
                     for k in range(KH) if (p + pad - k) % stride == 0])
    all_d = [d for t in taps for (d, _) in t]
    dmin, dmax = min(all_d), max(all_d)
    assert dmin <= 0 <= dmax
    D = dmax - dmin + 1                     # window size shared by all phases (=2)

    # NHWC + zero halo so every tap reads in-bounds: x_ext[t] == x[t + dmin] (0 outside).
    x_nhwc = jnp.transpose(x_nchw, (0, 2, 3, 1)).astype(jnp.bfloat16)
    x_ext = jnp.pad(x_nhwc, ((0, 0), (-dmin, dmax), (-dmin, dmax), (0, 0)))
    Hx, Wx = H + D - 1, W + D - 1

    # merged per-phase weight: (stride, stride, Cout, D, D, Cin) -> (P*Cout, D*D*Cin)
    P = stride * stride
    wm = jnp.zeros((stride, stride, Cout, D, D, Cin), jnp.float32)
    for ph in range(stride):
        for dh, kh in taps[ph]:
            for pw in range(stride):
                for dw, kw in taps[pw]:
                    wm = wm.at[ph, pw, :, dh - dmin, dw - dmin, :].set(
                        weight_iohw[:, :, kh, kw].T)            # (Cout, Cin)
    wm = wm.reshape(P * Cout, D * D * Cin).astype(jnp.bfloat16)

    gamma2 = gamma.reshape(Cout, 1).astype(jnp.float32)
    beta2 = beta.reshape(Cout, 1).astype(jnp.float32)

    R = N * H * W
    kernel = functools.partial(convtrans_bn_relu_kernel, H=H, W=W, D=D, eps=eps)
    out_p = pl.pallas_call(
        kernel,
        out_shape=jax.ShapeDtypeStruct((P, Cout, R), x_nchw.dtype),
        grid=(1,),                           # whole problem fits in VMEM -> single step
        in_specs=[
            pl.BlockSpec((N, Hx, Wx, Cin), lambda i: (0, 0, 0, 0)),
            pl.BlockSpec((P * Cout, D * D * Cin), lambda i: (0, 0)),
            pl.BlockSpec((Cout, 1), lambda i: (0, 0)),
            pl.BlockSpec((Cout, 1), lambda i: (0, 0)),
        ],
        out_specs=pl.BlockSpec((P, Cout, R), lambda i: (0, 0, 0)),
        compiler_params=pltpu.CompilerParams(dimension_semantics=("arbitrary",)),
    )(x_ext, wm, gamma2, beta2)

    # (ph, pw, o, n, a, b) -> NCHW with oh = stride*a + ph, ow = stride*b + pw
    out = out_p.reshape(stride, stride, Cout, N, H, W)
    out = jnp.transpose(out, (3, 2, 4, 0, 5, 1)).reshape(N, Cout, stride * H, stride * W)
    return out


def reference_convtrans_bn_relu(x, weight, gamma, beta, *, stride, pad, output_pad, eps=1e-5):
    """Pure-JAX (f32) reference mirroring the PyTorch module's forward."""
    Cin, Cout, KH, KW = weight.shape
    w_conv = jnp.transpose(jnp.flip(weight, (2, 3)), (1, 0, 2, 3))         # (Cout, Cin, KH, KW)
    pb = KH - 1 - pad
    pa = KH - 1 - pad + output_pad
    y = lax.conv_general_dilated(
        x, w_conv, window_strides=(1, 1),
        padding=((pb, pa), (pb, pa)),
        lhs_dilation=(stride, stride),
        dimension_numbers=('NCHW', 'OIHW', 'NCHW'))
    mean = y.mean(axis=(0, 2, 3), keepdims=True)
    var = ((y - mean) ** 2).mean(axis=(0, 2, 3), keepdims=True)
    yn = (y - mean) * lax.rsqrt(var + eps)
    yn = yn * gamma.reshape(1, -1, 1, 1) + beta.reshape(1, -1, 1, 1)
    return jnp.maximum(yn, 0.0)


if __name__ == "__main__":
    # small shapes consistent with the module: N=2, Cin=4, Cout=16, H=W=16,
    # ConvTranspose2d(kernel=3, stride=2, padding=1, output_padding=1, bias=False)
    N, Cin, Cout, H, W = 2, 4, 16, 16, 16
    stride, pad, output_pad = 2, 1, 1
    key = jax.random.PRNGKey(0)
    k1, k2, k3, k4 = jax.random.split(key, 4)

    x = jax.random.normal(k1, (N, Cin, H, W), jnp.float32)
    # ConvTranspose2d weight layout: (in_channels, out_channels, KH, KW), bias=False
    weight = 0.1 * jax.random.normal(k2, (Cin, Cout, 3, 3), jnp.float32)
    gamma = 1.0 + 0.1 * jax.random.normal(k3, (Cout,), jnp.float32)    # BatchNorm weight
    beta = 0.1 * jax.random.normal(k4, (Cout,), jnp.float32)           # BatchNorm bias

    out = convtrans_bn_relu(x, weight, gamma, beta,
                            stride=stride, pad=pad, output_pad=output_pad)
    out = jax.block_until_ready(out)

    ref = reference_convtrans_bn_relu(x, weight, gamma, beta,
                                      stride=stride, pad=pad, output_pad=output_pad)
    assert out.shape == (N, Cout, 2 * H, 2 * W)
    # bf16 MXU inputs with f32 accumulation -> slightly looser tolerance vs f32 reference
    assert jnp.allclose(out, ref, atol=3e-2, rtol=3e-2), "mismatch vs reference"

    # TODO(synk): BatchNorm running_mean/var side-state updates are not emitted (they do
    # not affect this forward's output).

    print("KERNEL_OK")
</pallas_src>

<mosaic_0001>
module attributes {stable_mosaic.version = 11 : i64} {
  func.func @convtrans_bn_relu_kernel(%arg0: i32, %arg1: memref<2x17x17x4xbf16, #tpu.memory_space<vmem>>, %arg2: memref<64x16xbf16, #tpu.memory_space<vmem>>, %arg3: memref<16x1xf32, #tpu.memory_space<vmem>>, %arg4: memref<16x1xf32, #tpu.memory_space<vmem>>, %arg5: memref<4x16x512xf32, #tpu.memory_space<vmem>>) attributes {dimension_semantics = [#tpu.dimension_semantics<arbitrary>], iteration_bounds = array<i64: 1>, scalar_prefetch = 0 : i64, scratch_operands = 0 : i64, tpu.core_type = #tpu.core_type<tc>, window_params = [{pipeline_mode = #tpu.pipeline_mode<synchronous>, transform_indices = @transform_0, window_bounds = array<i64: 2, 17, 17, 4>}, {pipeline_mode = #tpu.pipeline_mode<synchronous>, transform_indices = @transform_1, window_bounds = array<i64: 64, 16>}, {pipeline_mode = #tpu.pipeline_mode<synchronous>, transform_indices = @transform_2, window_bounds = array<i64: 16, 1>}, {pipeline_mode = #tpu.pipeline_mode<synchronous>, transform_indices = @transform_3, window_bounds = array<i64: 16, 1>}, {pipeline_mode = #tpu.pipeline_mode<synchronous>, transform_indices = @transform_4, window_bounds = array<i64: 4, 16, 512>}]} {
    %c0 = arith.constant 0 : index
    %c0_0 = arith.constant 0 : index
    %c0_1 = arith.constant 0 : index
    %c0_2 = arith.constant 0 : index
    %0 = vector.load %arg1[%c0, %c0_0, %c0_1, %c0_2] : memref<2x17x17x4xbf16, #tpu.memory_space<vmem>>, vector<2x17x17x4xbf16>
    %1 = vector.extract_strided_slice %0 {offsets = [0, 0, 0, 0], sizes = [2, 16, 16, 4], strides = [1, 1, 1, 1]} : vector<2x17x17x4xbf16> to vector<2x16x16x4xbf16>
    %2 = vector.shape_cast %1 : vector<2x16x16x4xbf16> to vector<512x4xbf16>
    %3 = vector.extract_strided_slice %0 {offsets = [0, 0, 1, 0], sizes = [2, 16, 16, 4], strides = [1, 1, 1, 1]} : vector<2x17x17x4xbf16> to vector<2x16x16x4xbf16>
    %4 = vector.shape_cast %3 : vector<2x16x16x4xbf16> to vector<512x4xbf16>
    %5 = vector.extract_strided_slice %0 {offsets = [0, 1, 0, 0], sizes = [2, 16, 16, 4], strides = [1, 1, 1, 1]} : vector<2x17x17x4xbf16> to vector<2x16x16x4xbf16>
    %6 = vector.shape_cast %5 : vector<2x16x16x4xbf16> to vector<512x4xbf16>
    %7 = vector.extract_strided_slice %0 {offsets = [0, 1, 1, 0], sizes = [2, 16, 16, 4], strides = [1, 1, 1, 1]} : vector<2x17x17x4xbf16> to vector<2x16x16x4xbf16>
    %8 = vector.shape_cast %7 : vector<2x16x16x4xbf16> to vector<512x4xbf16>
    %9 = tpu.concatenate %2, %4, %6, %8 in 1 : vector<512x4xbf16>, vector<512x4xbf16>, vector<512x4xbf16>, vector<512x4xbf16> -> vector<512x16xbf16>
    %c0_3 = arith.constant 0 : index
    %c0_4 = arith.constant 0 : index
    %10 = vector.load %arg2[%c0_3, %c0_4] : memref<64x16xbf16, #tpu.memory_space<vmem>>, vector<64x16xbf16>
    %cst = arith.constant dense<0.000000e+00> : vector<64x512xf32>
    %11 = tpu.matmul %10, %9, %cst {dimension_numbers = #tpu.dot_dimension_numbers<[1], [1], [0], [0], [0, 0, 1, 0], [], []>} : vector<64x16xbf16>, vector<512x16xbf16>, vector<64x512xf32> -> vector<64x512xf32>
    %12 = vector.shape_cast %11 : vector<64x512xf32> to vector<4x16x512xf32>
    %cst_5 = arith.constant dense<0.000000e+00> : vector<4x16xf32>
    %13 = vector.multi_reduction <add>, %12, %cst_5 [2] : vector<4x16x512xf32> to vector<4x16xf32>
    %14 = vector.shape_cast %13 : vector<4x16xf32> to vector<4x16x1xf32>
    %cst_6 = arith.constant dense<0.000000e+00> : vector<16x1xf32>
    %15 = vector.multi_reduction <add>, %14, %cst_6 [0] : vector<4x16x1xf32> to vector<16x1xf32>
    %16 = vector.shape_cast %15 : vector<16x1xf32> to vector<1x16x1xf32>
    %17 = arith.mulf %12, %12 : vector<4x16x512xf32>
    %cst_7 = arith.constant dense<0.000000e+00> : vector<4x16xf32>
    %18 = vector.multi_reduction <add>, %17, %cst_7 [2] : vector<4x16x512xf32> to vector<4x16xf32>
    %19 = vector.shape_cast %18 : vector<4x16xf32> to vector<4x16x1xf32>
    %cst_8 = arith.constant dense<0.000000e+00> : vector<16x1xf32>
    %20 = vector.multi_reduction <add>, %19, %cst_8 [0] : vector<4x16x1xf32> to vector<16x1xf32>
    %21 = vector.shape_cast %20 : vector<16x1xf32> to vector<1x16x1xf32>
    %cst_9 = arith.constant 4.8828125E-4 : f32
    %22 = vector.broadcast %cst_9 : f32 to vector<1x16x1xf32>
    %23 = arith.mulf %16, %22 : vector<1x16x1xf32>
    %cst_10 = arith.constant 4.8828125E-4 : f32
    %24 = vector.broadcast %cst_10 : f32 to vector<1x16x1xf32>
    %25 = arith.mulf %21, %24 : vector<1x16x1xf32>
    %26 = arith.mulf %23, %23 : vector<1x16x1xf32>
    %27 = arith.subf %25, %26 : vector<1x16x1xf32>
    %c0_11 = arith.constant 0 : index
    %c0_12 = arith.constant 0 : index
    %28 = vector.load %arg3[%c0_11, %c0_12] : memref<16x1xf32, #tpu.memory_space<vmem>>, vector<16x1xf32>
    %29 = vector.shape_cast %28 : vector<16x1xf32> to vector<1x16x1xf32>
    %cst_13 = arith.constant 9.99999974E-6 : f32
    %30 = vector.broadcast %cst_13 : f32 to vector<1x16x1xf32>
    %31 = arith.addf %27, %30 : vector<1x16x1xf32>
    %32 = math.rsqrt %31 : vector<1x16x1xf32>
    %33 = arith.mulf %29, %32 : vector<1x16x1xf32>
    %c0_14 = arith.constant 0 : index
    %c0_15 = arith.constant 0 : index
    %34 = vector.load %arg4[%c0_14, %c0_15] : memref<16x1xf32, #tpu.memory_space<vmem>>, vector<16x1xf32>
    %35 = vector.shape_cast %34 : vector<16x1xf32> to vector<1x16x1xf32>
    %36 = arith.mulf %23, %33 : vector<1x16x1xf32>
    %37 = arith.subf %35, %36 : vector<1x16x1xf32>
    %38 = vector.broadcast %33 : vector<1x16x1xf32> to vector<4x16x512xf32>
    %39 = arith.mulf %12, %38 : vector<4x16x512xf32>
    %40 = vector.broadcast %37 : vector<1x16x1xf32> to vector<4x16x512xf32>
    %41 = arith.addf %39, %40 : vector<4x16x512xf32>
    %cst_16 = arith.constant 0.000000e+00 : f32
    %42 = vector.broadcast %cst_16 : f32 to vector<4x16x512xf32>
    %43 = arith.maximumf %41, %42 : vector<4x16x512xf32>
    %c0_17 = arith.constant 0 : index
    %c0_18 = arith.constant 0 : index
    %c0_19 = arith.constant 0 : index
    %44 = vector.load %arg5[%c0_17, %c0_18, %c0_19] : memref<4x16x512xf32, #tpu.memory_space<vmem>>, vector<4x16x512xf32>
    tpu.vector_store %arg5[%c0_17, %c0_18, %c0_19], %43 {strides = array<i32>} : memref<4x16x512xf32, #tpu.memory_space<vmem>>, vector<4x16x512xf32>,
    return
  }
  func.func @transform_0(%arg0: i32) -> (i32, i32, i32, i32) {
    %c0_i32 = arith.constant 0 : i32
    %c0_i32_0 = arith.constant 0 : i32
    %c0_i32_1 = arith.constant 0 : i32
    %c0_i32_2 = arith.constant 0 : i32
    %c0_i32_3 = arith.constant 0 : i32
    return %c0_i32, %c0_i32_0, %c0_i32_1, %c0_i32_2 : i32, i32, i32, i32
  }
  func.func @transform_1(%arg0: i32) -> (i32, i32) {
    %c0_i32 = arith.constant 0 : i32
    %c0_i32_0 = arith.constant 0 : i32
    %c0_i32_1 = arith.constant 0 : i32
    return %c0_i32, %c0_i32_0 : i32, i32
  }
  func.func @transform_2(%arg0: i32) -> (i32, i32) {
    %c0_i32 = arith.constant 0 : i32
    %c0_i32_0 = arith.constant 0 : i32
    %c0_i32_1 = arith.constant 0 : i32
    return %c0_i32, %c0_i32_0 : i32, i32
  }
  func.func @transform_3(%arg0: i32) -> (i32, i32) {
    %c0_i32 = arith.constant 0 : i32
    %c0_i32_0 = arith.constant 0 : i32
    %c0_i32_1 = arith.constant 0 : i32
    return %c0_i32, %c0_i32_0 : i32, i32
  }
  func.func @transform_4(%arg0: i32) -> (i32, i32, i32) {
    %c0_i32 = arith.constant 0 : i32
    %c0_i32_0 = arith.constant 0 : i32
    %c0_i32_1 = arith.constant 0 : i32
    %c0_i32_2 = arith.constant 0 : i32
    return %c0_i32, %c0_i32_0, %c0_i32_1 : i32, i32, i32
  }
}

</mosaic_0001>

<llo_original>
// kernel: tpu_custom_call.1
$region0: #{tpu_custom_call.1}
  #allocation0 [shape = 'u32[]', space=smem, size = 0x4, offset = 0x4, fixed_abs, tag = 'smem constant byte address 0x4 - core index']
  #allocation1 [shape = 'u32[144,128]{1,0:T(1,128)}', space=vmem, size = 0x12000, scoped, tag = 'internal scratch']
  %s0 = inlined_call_operand.vmem [shape: bf16[2,17,17,4], index: 0, kind: input, shape index: {}]
  %s1 = inlined_call_operand.vmem [shape: bf16[64,16], index: 1, kind: input, shape index: {}]
  %s2 = inlined_call_operand.vmem [shape: f32[16,1], index: 2, kind: input, shape index: {}]
  %s3 = inlined_call_operand.vmem [shape: f32[16,1], index: 3, kind: input, shape index: {}]
  %s4 = inlined_call_operand.hbm [shape: f32[4,16,512], index: 4, kind: output, shape index: {}]
  %s5 = sld [smem:[#allocation0]]
  $region26: #{tpu_custom_call.1} parent=0
    _
  %s7 = ssub.s32 1, %s5
  %s8 = scalar_select 0, %s7, %s5
  $region1: #{tpu_custom_call.1} parent=0
    #allocation2 [shape = 'u8[131072]{0}', space=vmem, size = 0x20000, scoped, tag = 'output window, operand 0, single buffered']
    #allocation3 [shape = 's32[1]{0}', space=sflag, size = 0x4, scoped, tag = 'scoped memory for tpu_custom_call.1']
    %9 = vsyncpa [#allocation3], 0
    // Predicated region
    $region2: #{tpu_custom_call.1} parent=1 // pred_check
      _
    $region3: #{tpu_custom_call.1} parent=1 // pred_check_branch
      %11 = sbr.rel (0) target = $region5
    $region4: #{tpu_custom_call.1} parent=1 // pred_region
      _
    $region5: #{tpu_custom_call.1} parent=1 // pred_fallthru
      _
    // Predicated region
    $region6: #{tpu_custom_call.1} parent=1 // pred_check
      _
    $region7: #{tpu_custom_call.1} parent=1 // pred_check_branch
      %13 = sbr.rel (0) target = $region9
    $region8: #{tpu_custom_call.1} parent=1 // pred_region
      _
    $region9: #{tpu_custom_call.1} parent=1 // pred_fallthru
      _
    // Predicated region
    $region10: #{tpu_custom_call.1} parent=1 // pred_check
      _
    $region11: #{tpu_custom_call.1} parent=1 // pred_check_branch
      %15 = sbr.rel (0) target = $region13
    $region12: #{tpu_custom_call.1} parent=1 // pred_region
      _
    $region13: #{tpu_custom_call.1} parent=1 // pred_fallthru
      _
    // Predicated region
    $region14: #{tpu_custom_call.1} parent=1 // pred_check
      _
    $region15: #{tpu_custom_call.1} parent=1 // pred_check_branch
      %17 = sbr.rel (0) target = $region17
    $region16: #{tpu_custom_call.1} parent=1 // pred_region
      _
    $region17: #{tpu_custom_call.1} parent=1 // pred_fallthru
      _
    %v19 = vld [vmem:[%s0] sm:$0xf]
    %v20 = vld [vmem:[%s0 + $0x4] sm:$0xf]
    %v21 = vld [vmem:[%s0 + $0x8] sm:$0x1]
    %v22 = vld [vmem:[%s0 + $0xc] sm:$0xf]
    %v23 = vld [vmem:[%s0 + $0x10] sm:$0xf]
    %v24 = vld [vmem:[%s0 + $0x14] sm:$0x1]
    %v25 = vld [vmem:[%s0 + $0x18] sm:$0xf]
    %v26 = vld [vmem:[%s0 + $0x1c] sm:$0xf]
    %v27 = vld [vmem:[%s0 + $0x20] sm:$0x1]
    %v28 = vld [vmem:[%s0 + $0x24] sm:$0xf]
    %v29 = vld [vmem:[%s0 + $0x28] sm:$0xf]
    %v30 = vld [vmem:[%s0 + $0x2c] sm:$0x1]
    %v31 = vld [vmem:[%s0 + $0x30] sm:$0xf]
    %v32 = vld [vmem:[%s0 + $0x34] sm:$0xf]
    %v33 = vld [vmem:[%s0 + $0x38] sm:$0x1]
    %v34 = vld [vmem:[%s0 + $0x3c] sm:$0xf]
    %v35 = vld [vmem:[%s0 + $0x40] sm:$0xf]
    %v36 = vld [vmem:[%s0 + $0x44] sm:$0x1]
    %v37 = vld [vmem:[%s0 + $0x48] sm:$0xf]
    %v38 = vld [vmem:[%s0 + $0x4c] sm:$0xf]
    %v39 = vld [vmem:[%s0 + $0x50] sm:$0x1]
    %v40 = vld [vmem:[%s0 + $0x54] sm:$0xf]
    %v41 = vld [vmem:[%s0 + $0x58] sm:$0xf]
    %v42 = vld [vmem:[%s0 + $0x5c] sm:$0x1]
    %v43 = vld [vmem:[%s0 + $0x60] sm:$0xf]
    %v44 = vld [vmem:[%s0 + $0x64] sm:$0xf]
    %v45 = vld [vmem:[%s0 + $0x68] sm:$0x1]
    %v46 = vld [vmem:[%s0 + $0x6c] sm:$0xf]
    %v47 = vld [vmem:[%s0 + $0x70] sm:$0xf]
    %v48 = vld [vmem:[%s0 + $0x74] sm:$0x1]
    %v49 = vld [vmem:[%s0 + $0x78] sm:$0xf]
    %v50 = vld [vmem:[%s0 + $0x7c] sm:$0xf]
    %v51 = vld [vmem:[%s0 + $0x80] sm:$0x1]
    %v52 = vld [vmem:[%s0 + $0x84] sm:$0xf]
    %v53 = vld [vmem:[%s0 + $0x88] sm:$0xf]
    %v54 = vld [vmem:[%s0 + $0x8c] sm:$0x1]
    %v55 = vld [vmem:[%s0 + $0x90] sm:$0xf]
    %v56 = vld [vmem:[%s0 + $0x94] sm:$0xf]
    %v57 = vld [vmem:[%s0 + $0x98] sm:$0x1]
    %v58 = vld [vmem:[%s0 + $0x9c] sm:$0xf]
    %v59 = vld [vmem:[%s0 + $0xa0] sm:$0xf]
    %v60 = vld [vmem:[%s0 + $0xa4] sm:$0x1]
    %v61 = vld [vmem:[%s0 + $0xa8] sm:$0xf]
    %v62 = vld [vmem:[%s0 + $0xac] sm:$0xf]
    %v63 = vld [vmem:[%s0 + $0xb0] sm:$0x1]
    %v64 = vld [vmem:[%s0 + $0xb4] sm:$0xf]
    %v65 = vld [vmem:[%s0 + $0xb8] sm:$0xf]
    %v66 = vld [vmem:[%s0 + $0xbc] sm:$0x1]
    %v67 = vld [vmem:[%s0 + $0xc0] sm:$0xf]
    %v68 = vld [vmem:[%s0 + $0xc4] sm:$0xf]
    %v69 = vld [vmem:[%s0 + $0xc8] sm:$0x1]
    %v70 = vld [vmem:[%s0 + $0xcc] sm:$0xf]
    %v71 = vld [vmem:[%s0 + $0xd0] sm:$0xf]
    %v72 = vld [vmem:[%s0 + $0xd4] sm:$0x1]
    %v73 = vld [vmem:[%s0 + $0xd8] sm:$0xf]
    %v74 = vld [vmem:[%s0 + $0xdc] sm:$0xf]
    %v75 = vld [vmem:[%s0 + $0xe0] sm:$0x1]
    %v76 = vld [vmem:[%s0 + $0xe4] sm:$0xf]
    %v77 = vld [vmem:[%s0 + $0xe8] sm:$0xf]
    %v78 = vld [vmem:[%s0 + $0xec] sm:$0x1]
    %v79 = vld [vmem:[%s0 + $0xf0] sm:$0xf]
    %v80 = vld [vmem:[%s0 + $0xf4] sm:$0xf]
    %v81 = vld [vmem:[%s0 + $0xf8] sm:$0x1]
    %v82 = vld [vmem:[%s0 + $0xfc] sm:$0xf]
    %v83 = vld [vmem:[%s0 + $0x100] sm:$0xf]
    %v84 = vld [vmem:[%s0 + $0x104] sm:$0x1]
    %v85 = vld [vmem:[%s0 + $0x108] sm:$0xf]
    %v86 = vld [vmem:[%s0 + $0x10c] sm:$0xf]
    %v87 = vld [vmem:[%s0 + $0x110] sm:$0x1]
    %v88 = vld [vmem:[%s0 + $0x114] sm:$0xf]
    %v89 = vld [vmem:[%s0 + $0x118] sm:$0xf]
    %v90 = vld [vmem:[%s0 + $0x11c] sm:$0x1]
    %v91 = vld [vmem:[%s0 + $0x120] sm:$0xf]
    %v92 = vld [vmem:[%s0 + $0x124] sm:$0xf]
    %v93 = vld [vmem:[%s0 + $0x128] sm:$0x1]
    %v94 = vld [vmem:[%s0 + $0x12c] sm:$0xf]
    %v95 = vld [vmem:[%s0 + $0x130] sm:$0xf]
    %v96 = vld [vmem:[%s0 + $0x134] sm:$0x1]
    %v97 = vld [vmem:[%s0 + $0x138] sm:$0xf]
    %v98 = vld [vmem:[%s0 + $0x13c] sm:$0xf]
    %v99 = vld [vmem:[%s0 + $0x140] sm:$0x1]
    %v100 = vld [vmem:[%s0 + $0x144] sm:$0xf]
    %v101 = vld [vmem:[%s0 + $0x148] sm:$0xf]
    %v102 = vld [vmem:[%s0 + $0x14c] sm:$0x1]
    %v103 = vld [vmem:[%s0 + $0x150] sm:$0xf]
    %v104 = vld [vmem:[%s0 + $0x154] sm:$0xf]
    %v105 = vld [vmem:[%s0 + $0x158] sm:$0x1]
    %v106 = vld [vmem:[%s0 + $0x15c] sm:$0xf]
    %v107 = vld [vmem:[%s0 + $0x160] sm:$0xf]
    %v108 = vld [vmem:[%s0 + $0x164] sm:$0x1]
    %v109 = vld [vmem:[%s0 + $0x168] sm:$0xf]
    %v110 = vld [vmem:[%s0 + $0x16c] sm:$0xf]
    %v111 = vld [vmem:[%s0 + $0x170] sm:$0x1]
    %v112 = vld [vmem:[%s0 + $0x174] sm:$0xf]
    %v113 = vld [vmem:[%s0 + $0x178] sm:$0xf]
    %v114 = vld [vmem:[%s0 + $0x17c] sm:$0x1]
    %v115 = vld [vmem:[%s0 + $0x180] sm:$0xf]
    %v116 = vld [vmem:[%s0 + $0x184] sm:$0xf]
    %v117 = vld [vmem:[%s0 + $0x188] sm:$0x1]
    %v118 = vld [vmem:[%s0 + $0x18c] sm:$0xf]
    %v119 = vld [vmem:[%s0 + $0x190] sm:$0xf]
    %v120 = vld [vmem:[%s0 + $0x194] sm:$0x1]
    %vm121 = vsmask.f32 3328
    %vm122 = vsmask.f32 7440
    %vm123 = vmor %vm121, %vm122
    %v125 = vshrl.u32 %v19, 16
    %v127 = vrot.slane %v125, 4
    %v128 = vshll.u32 %v19, 16
    %v130 = vrot.slane %v128, 5
    %v131 = vor.u32 %v127, %v130
    %v132 = vrot.slane %v131, 4
    %v134 = vshll.u32 %v20, 16
    %v136 = vrot.slane %v134, 5
    %v137 = vsel %vm123, %v132, %v136
    %v138 = vshrl.u32 %v20, 16
    %v140 = vrot.slane %v138, 4
    %v141 = vor.u32 %v140, %v136
    %v142 = vrot.slane %v141, 4
    %v144 = vshll.u32 %v21, 16
    %v146 = vrot.slane %v144, 5
    %v147 = vsel %vm123, %v142, %v146
    %v149 = vshrl.u32 %v22, 16
    %v151 = vrot.slane %v149, 4
    %v152 = vshll.u32 %v22, 16
    %v154 = vrot.slane %v152, 5
    %v155 = vor.u32 %v151, %v154
    %v156 = vrot.slane %v155, 4
    %v158 = vshll.u32 %v23, 16
    %v160 = vrot.slane %v158, 5
    %v161 = vsel %vm123, %v156, %v160
    %v162 = vshrl.u32 %v23, 16
    %v164 = vrot.slane %v162, 4
    %v165 = vor.u32 %v164, %v160
    %v166 = vrot.slane %v165, 4
    %v168 = vshll.u32 %v24, 16
    %v170 = vrot.slane %v168, 5
    %v171 = vsel %vm123, %v166, %v170
    %v173 = vshrl.u32 %v25, 16
    %v175 = vrot.slane %v173, 4
    %v176 = vshll.u32 %v25, 16
    %v178 = vrot.slane %v176, 5
    %v179 = vor.u32 %v175, %v178
    %v180 = vrot.slane %v179, 4
    %v182 = vshll.u32 %v26, 16
    %v184 = vrot.slane %v182, 5
    %v185 = vsel %vm123, %v180, %v184
    %v186 = vshrl.u32 %v26, 16
    %v188 = vrot.slane %v186, 4
    %v189 = vor.u32 %v188, %v184
    %v190 = vrot.slane %v189, 4
    %v192 = vshll.u32 %v27, 16
    %v194 = vrot.slane %v192, 5
    %v195 = vsel %vm123, %v190, %v194
    %v197 = vshrl.u32 %v28, 16
    %v199 = vrot.slane %v197, 4
    %v200 = vshll.u32 %v28, 16
    %v202 = vrot.slane %v200, 5
    %v203 = vor.u32 %v199, %v202
    %v204 = vrot.slane %v203, 4
    %v206 = vshll.u32 %v29, 16
    %v208 = vrot.slane %v206, 5
    %v209 = vsel %vm123, %v204, %v208
    %v210 = vshrl.u32 %v29, 16
    %v212 = vrot.slane %v210, 4
    %v213 = vor.u32 %v212, %v208
    %v214 = vrot.slane %v213, 4
    %v216 = vshll.u32 %v30, 16
    %v218 = vrot.slane %v216, 5
    %v219 = vsel %vm123, %v214, %v218
    %v221 = vshrl.u32 %v31, 16
    %v223 = vrot.slane %v221, 4
    %v224 = vshll.u32 %v31, 16
    %v226 = vrot.slane %v224, 5
    %v227 = vor.u32 %v223, %v226
    %v228 = vrot.slane %v227, 4
    %v230 = vshll.u32 %v32, 16
    %v232 = vrot.slane %v230, 5
    %v233 = vsel %vm123, %v228, %v232
    %v234 = vshrl.u32 %v32, 16
    %v236 = vrot.slane %v234, 4
    %v237 = vor.u32 %v236, %v232
    %v238 = vrot.slane %v237, 4
    %v240 = vshll.u32 %v33, 16
    %v242 = vrot.slane %v240, 5
    %v243 = vsel %vm123, %v238, %v242
    %v245 = vshrl.u32 %v34, 16
    %v247 = vrot.slane %v245, 4
    %v248 = vshll.u32 %v34, 16
    %v250 = vrot.slane %v248, 5
    %v251 = vor.u32 %v247, %v250
    %v252 = vrot.slane %v251, 4
    %v254 = vshll.u32 %v35, 16
    %v256 = vrot.slane %v254, 5
    %v257 = vsel %vm123, %v252, %v256
    %v258 = vshrl.u32 %v35, 16
    %v260 = vrot.slane %v258, 4
    %v261 = vor.u32 %v260, %v256
    %v262 = vrot.slane %v261, 4
    %v264 = vshll.u32 %v36, 16
    %v266 = vrot.slane %v264, 5
    %v267 = vsel %vm123, %v262, %v266
    %v269 = vshrl.u32 %v37, 16
    %v271 = vrot.slane %v269, 4
    %v272 = vshll.u32 %v37, 16
    %v274 = vrot.slane %v272, 5
    %v275 = vor.u32 %v271, %v274
    %v276 = vrot.slane %v275, 4
    %v278 = vshll.u32 %v38, 16
    %v280 = vrot.slane %v278, 5
    %v281 = vsel %vm123, %v276, %v280
    %v282 = vshrl.u32 %v38, 16
    %v284 = vrot.slane %v282, 4
    %v285 = vor.u32 %v284, %v280
    %v286 = vrot.slane %v285, 4
    %v288 = vshll.u32 %v39, 16
    %v290 = vrot.slane %v288, 5
    %v291 = vsel %vm123, %v286, %v290
    %v293 = vshrl.u32 %v40, 16
    %v295 = vrot.slane %v293, 4
    %v296 = vshll.u32 %v40, 16
    %v298 = vrot.slane %v296, 5
    %v299 = vor.u32 %v295, %v298
    %v300 = vrot.slane %v299, 4
    %v302 = vshll.u32 %v41, 16
    %v304 = vrot.slane %v302, 5
    %v305 = vsel %vm123, %v300, %v304
    %v306 = vshrl.u32 %v41, 16
    %v308 = vrot.slane %v306, 4
    %v309 = vor.u32 %v308, %v304
    %v310 = vrot.slane %v309, 4
    %v312 = vshll.u32 %v42, 16
    %v314 = vrot.slane %v312, 5
    %v315 = vsel %vm123, %v310, %v314
    %v317 = vshrl.u32 %v43, 16
    %v319 = vrot.slane %v317, 4
    %v320 = vshll.u32 %v43, 16
    %v322 = vrot.slane %v320, 5
    %v323 = vor.u32 %v319, %v322
    %v324 = vrot.slane %v323, 4
    %v326 = vshll.u32 %v44, 16
    %v328 = vrot.slane %v326, 5
    %v329 = vsel %vm123, %v324, %v328
    %v330 = vshrl.u32 %v44, 16
    %v332 = vrot.slane %v330, 4
    %v333 = vor.u32 %v332, %v328
    %v334 = vrot.slane %v333, 4
    %v336 = vshll.u32 %v45, 16
    %v338 = vrot.slane %v336, 5
    %v339 = vsel %vm123, %v334, %v338
    %v341 = vshrl.u32 %v46, 16
    %v343 = vrot.slane %v341, 4
    %v344 = vshll.u32 %v46, 16
    %v346 = vrot.slane %v344, 5
    %v347 = vor.u32 %v343, %v346
    %v348 = vrot.slane %v347, 4
    %v350 = vshll.u32 %v47, 16
    %v352 = vrot.slane %v350, 5
    %v353 = vsel %vm123, %v348, %v352
    %v354 = vshrl.u32 %v47, 16
    %v356 = vrot.slane %v354, 4
    %v357 = vor.u32 %v356, %v352
    %v358 = vrot.slane %v357, 4
    %v360 = vshll.u32 %v48, 16
    %v362 = vrot.slane %v360, 5
    %v363 = vsel %vm123, %v358, %v362
    %v365 = vshrl.u32 %v49, 16
    %v367 = vrot.slane %v365, 4
    %v368 = vshll.u32 %v49, 16
    %v370 = vrot.slane %v368, 5
    %v371 = vor.u32 %v367, %v370
    %v372 = vrot.slane %v371, 4
    %v374 = vshll.u32 %v50, 16
    %v376 = vrot.slane %v374, 5
    %v377 = vsel %vm123, %v372, %v376
    %v378 = vshrl.u32 %v50, 16
    %v380 = vrot.slane %v378, 4
    %v381 = vor.u32 %v380, %v376
    %v382 = vrot.slane %v381, 4
    %v384 = vshll.u32 %v51, 16
    %v386 = vrot.slane %v384, 5
    %v387 = vsel %vm123, %v382, %v386
    %v389 = vshrl.u32 %v52, 16
    %v391 = vrot.slane %v389, 4
    %v392 = vshll.u32 %v52, 16
    %v394 = vrot.slane %v392, 5
    %v395 = vor.u32 %v391, %v394
    %v396 = vrot.slane %v395, 4
    %v398 = vshll.u32 %v53, 16
    %v400 = vrot.slane %v398, 5
    %v401 = vsel %vm123, %v396, %v400
    %v402 = vshrl.u32 %v53, 16
    %v404 = vrot.slane %v402, 4
    %v405 = vor.u32 %v404, %v400
    %v406 = vrot.slane %v405, 4
    %v408 = vshll.u32 %v54, 16
    %v410 = vrot.slane %v408, 5
    %v411 = vsel %vm123, %v406, %v410
    %v413 = vshrl.u32 %v55, 16
    %v415 = vrot.slane %v413, 4
    %v416 = vshll.u32 %v55, 16
    %v418 = vrot.slane %v416, 5
    %v419 = vor.u32 %v415, %v418
    %v420 = vrot.slane %v419, 4
    %v422 = vshll.u32 %v56, 16
    %v424 = vrot.slane %v422, 5
    %v425 = vsel %vm123, %v420, %v424
    %v426 = vshrl.u32 %v56, 16
    %v428 = vrot.slane %v426, 4
    %v429 = vor.u32 %v428, %v424
    %v430 = vrot.slane %v429, 4
    %v432 = vshll.u32 %v57, 16
    %v434 = vrot.slane %v432, 5
    %v435 = vsel %vm123, %v430, %v434
    %v437 = vshrl.u32 %v58, 16
    %v439 = vrot.slane %v437, 4
    %v440 = vshll.u32 %v58, 16
    %v442 = vrot.slane %v440, 5
    %v443 = vor.u32 %v439, %v442
    %v444 = vrot.slane %v443, 4
    %v446 = vshll.u32 %v59, 16
    %v448 = vrot.slane %v446, 5
    %v449 = vsel %vm123, %v444, %v448
    %v450 = vshrl.u32 %v59, 16
    %v452 = vrot.slane %v450, 4
    %v453 = vor.u32 %v452, %v448
    %v454 = vrot.slane %v453, 4
    %v456 = vshll.u32 %v60, 16
    %v458 = vrot.slane %v456, 5
    %v459 = vsel %vm123, %v454, %v458
    %v461 = vshrl.u32 %v61, 16
    %v463 = vrot.slane %v461, 4
    %v464 = vshll.u32 %v61, 16
    %v466 = vrot.slane %v464, 5
    %v467 = vor.u32 %v463, %v466
    %v468 = vrot.slane %v467, 4
    %v470 = vshll.u32 %v62, 16
    %v472 = vrot.slane %v470, 5
    %v473 = vsel %vm123, %v468, %v472
    %v474 = vshrl.u32 %v62, 16
    %v476 = vrot.slane %v474, 4
    %v477 = vor.u32 %v476, %v472
    %v478 = vrot.slane %v477, 4
    %v480 = vshll.u32 %v63, 16
    %v482 = vrot.slane %v480, 5
    %v483 = vsel %vm123, %v478, %v482
    %v485 = vshrl.u32 %v64, 16
    %v487 = vrot.slane %v485, 4
    %v488 = vshll.u32 %v64, 16
    %v490 = vrot.slane %v488, 5
    %v491 = vor.u32 %v487, %v490
    %v492 = vrot.slane %v491, 4
    %v494 = vshll.u32 %v65, 16
    %v496 = vrot.slane %v494, 5
    %v497 = vsel %vm123, %v492, %v496
    %v498 = vshrl.u32 %v65, 16
    %v500 = vrot.slane %v498, 4
    %v501 = vor.u32 %v500, %v496
    %v502 = vrot.slane %v501, 4
    %v504 = vshll.u32 %v66, 16
    %v506 = vrot.slane %v504, 5
    %v507 = vsel %vm123, %v502, %v506
    %v509 = vshrl.u32 %v70, 16
    %v511 = vrot.slane %v509, 4
    %v512 = vshll.u32 %v70, 16
    %v514 = vrot.slane %v512, 5
    %v515 = vor.u32 %v511, %v514
    %v516 = vrot.slane %v515, 4
    %v518 = vshll.u32 %v71, 16
    %v520 = vrot.slane %v518, 5
    %v521 = vsel %vm123, %v516, %v520
    %v522 = vshrl.u32 %v71, 16
    %v524 = vrot.slane %v522, 4
    %v525 = vor.u32 %v524, %v520
    %v526 = vrot.slane %v525, 4
    %v528 = vshll.u32 %v72, 16
    %v530 = vrot.slane %v528, 5
    %v531 = vsel %vm123, %v526, %v530
    %v533 = vshrl.u32 %v73, 16
    %v535 = vrot.slane %v533, 4
    %v536 = vshll.u32 %v73, 16
    %v538 = vrot.slane %v536, 5
    %v539 = vor.u32 %v535, %v538
    %v540 = vrot.slane %v539, 4
    %v542 = vshll.u32 %v74, 16
    %v544 = vrot.slane %v542, 5
    %v545 = vsel %vm123, %v540, %v544
    %v546 = vshrl.u32 %v74, 16
    %v548 = vrot.slane %v546, 4
    %v549 = vor.u32 %v548, %v544
    %v550 = vrot.slane %v549, 4
    %v552 = vshll.u32 %v75, 16
    %v554 = vrot.slane %v552, 5
    %v555 = vsel %vm123, %v550, %v554
    %v557 = vshrl.u32 %v76, 16
    %v559 = vrot.slane %v557, 4
    %v560 = vshll.u32 %v76, 16
    %v562 = vrot.slane %v560, 5
    %v563 = vor.u32 %v559, %v562
    %v564 = vrot.slane %v563, 4
    %v566 = vshll.u32 %v77, 16
    %v568 = vrot.slane %v566, 5
    %v569 = vsel %vm123, %v564, %v568
    %v570 = vshrl.u32 %v77, 16
    %v572 = vrot.slane %v570, 4
    %v573 = vor.u32 %v572, %v568
    %v574 = vrot.slane %v573, 4
    %v576 = vshll.u32 %v78, 16
    %v578 = vrot.slane %v576, 5
    %v579 = vsel %vm123, %v574, %v578
    %v581 = vshrl.u32 %v79, 16
    %v583 = vrot.slane %v581, 4
    %v584 = vshll.u32 %v79, 16
    %v586 = vrot.slane %v584, 5
    %v587 = vor.u32 %v583, %v586
    %v588 = vrot.slane %v587, 4
    %v590 = vshll.u32 %v80, 16
    %v592 = vrot.slane %v590, 5
    %v593 = vsel %vm123, %v588, %v592
    %v594 = vshrl.u32 %v80, 16
    %v596 = vrot.slane %v594, 4
    %v597 = vor.u32 %v596, %v592
    %v598 = vrot.slane %v597, 4
    %v600 = vshll.u32 %v81, 16
    %v602 = vrot.slane %v600, 5
    %v603 = vsel %vm123, %v598, %v602
    %v605 = vshrl.u32 %v82, 16
    %v607 = vrot.slane %v605, 4
    %v608 = vshll.u32 %v82, 16
    %v610 = vrot.slane %v608, 5
    %v611 = vor.u32 %v607, %v610
    %v612 = vrot.slane %v611, 4
    %v614 = vshll.u32 %v83, 16
    %v616 = vrot.slane %v614, 5
    %v617 = vsel %vm123, %v612, %v616
    %v618 = vshrl.u32 %v83, 16
    %v620 = vrot.slane %v618, 4
    %v621 = vor.u32 %v620, %v616
    %v622 = vrot.slane %v621, 4
    %v624 = vshll.u32 %v84, 16
    %v626 = vrot.slane %v624, 5
    %v627 = vsel %vm123, %v622, %v626
    %v629 = vshrl.u32 %v85, 16
    %v631 = vrot.slane %v629, 4
    %v632 = vshll.u32 %v85, 16
    %v634 = vrot.slane %v632, 5
    %v635 = vor.u32 %v631, %v634
    %v636 = vrot.slane %v635, 4
    %v638 = vshll.u32 %v86, 16
    %v640 = vrot.slane %v638, 5
    %v641 = vsel %vm123, %v636, %v640
    %v642 = vshrl.u32 %v86, 16
    %v644 = vrot.slane %v642, 4
    %v645 = vor.u32 %v644, %v640
    %v646 = vrot.slane %v645, 4
    %v648 = vshll.u32 %v87, 16
    %v650 = vrot.slane %v648, 5
    %v651 = vsel %vm123, %v646, %v650
    %v653 = vshrl.u32 %v88, 16
    %v655 = vrot.slane %v653, 4
    %v656 = vshll.u32 %v88, 16
    %v658 = vrot.slane %v656, 5
    %v659 = vor.u32 %v655, %v658
    %v660 = vrot.slane %v659, 4
    %v662 = vshll.u32 %v89, 16
    %v664 = vrot.slane %v662, 5
    %v665 = vsel %vm123, %v660, %v664
    %v666 = vshrl.u32 %v89, 16
    %v668 = vrot.slane %v666, 4
    %v669 = vor.u32 %v668, %v664
    %v670 = vrot.slane %v669, 4
    %v672 = vshll.u32 %v90, 16
    %v674 = vrot.slane %v672, 5
    %v675 = vsel %vm123, %v670, %v674
    %v677 = vshrl.u32 %v91, 16
    %v679 = vrot.slane %v677, 4
    %v680 = vshll.u32 %v91, 16
    %v682 = vrot.slane %v680, 5
    %v683 = vor.u32 %v679, %v682
    %v684 = vrot.slane %v683, 4
    %v686 = vshll.u32 %v92, 16
    %v688 = vrot.slane %v686, 5
    %v689 = vsel %vm123, %v684, %v688
    %v690 = vshrl.u32 %v92, 16
    %v692 = vrot.slane %v690, 4
    %v693 = vor.u32 %v692, %v688
    %v694 = vrot.slane %v693, 4
    %v696 = vshll.u32 %v93, 16
    %v698 = vrot.slane %v696, 5
    %v699 = vsel %vm123, %v694, %v698
    %v701 = vshrl.u32 %v94, 16
    %v703 = vrot.slane %v701, 4
    %v704 = vshll.u32 %v94, 16
    %v706 = vrot.slane %v704, 5
    %v707 = vor.u32 %v703, %v706
    %v708 = vrot.slane %v707, 4
    %v710 = vshll.u32 %v95, 16
    %v712 = vrot.slane %v710, 5
    %v713 = vsel %vm123, %v708, %v712
    %v714 = vshrl.u32 %v95, 16
    %v716 = vrot.slane %v714, 4
    %v717 = vor.u32 %v716, %v712
    %v718 = vrot.slane %v717, 4
    %v720 = vshll.u32 %v96, 16
    %v722 = vrot.slane %v720, 5
    %v723 = vsel %vm123, %v718, %v722
    %v725 = vshrl.u32 %v97, 16
    %v727 = vrot.slane %v725, 4
    %v728 = vshll.u32 %v97, 16
    %v730 = vrot.slane %v728, 5
    %v731 = vor.u32 %v727, %v730
    %v732 = vrot.slane %v731, 4
    %v734 = vshll.u32 %v98, 16
    %v736 = vrot.slane %v734, 5
    %v737 = vsel %vm123, %v732, %v736
    %v738 = vshrl.u32 %v98, 16
    %v740 = vrot.slane %v738, 4
    %v741 = vor.u32 %v740, %v736
    %v742 = vrot.slane %v741, 4
    %v744 = vshll.u32 %v99, 16
    %v746 = vrot.slane %v744, 5
    %v747 = vsel %vm123, %v742, %v746
    %v749 = vshrl.u32 %v100, 16
    %v751 = vrot.slane %v749, 4
    %v752 = vshll.u32 %v100, 16
    %v754 = vrot.slane %v752, 5
    %v755 = vor.u32 %v751, %v754
    %v756 = vrot.slane %v755, 4
    %v758 = vshll.u32 %v101, 16
    %v760 = vrot.slane %v758, 5
    %v761 = vsel %vm123, %v756, %v760
    %v762 = vshrl.u32 %v101, 16
    %v764 = vrot.slane %v762, 4
    %v765 = vor.u32 %v764, %v760
    %v766 = vrot.slane %v765, 4
    %v768 = vshll.u32 %v102, 16
    %v770 = vrot.slane %v768, 5
    %v771 = vsel %vm123, %v766, %v770
    %v773 = vshrl.u32 %v103, 16
    %v775 = vrot.slane %v773, 4
    %v776 = vshll.u32 %v103, 16
    %v778 = vrot.slane %v776, 5
    %v779 = vor.u32 %v775, %v778
    %v780 = vrot.slane %v779, 4
    %v782 = vshll.u32 %v104, 16
    %v784 = vrot.slane %v782, 5
    %v785 = vsel %vm123, %v780, %v784
    %v786 = vshrl.u32 %v104, 16
    %v788 = vrot.slane %v786, 4
    %v789 = vor.u32 %v788, %v784
    %v790 = vrot.slane %v789, 4
    %v792 = vshll.u32 %v105, 16
    %v794 = vrot.slane %v792, 5
    %v795 = vsel %vm123, %v790, %v794
    %v797 = vshrl.u32 %v106, 16
    %v799 = vrot.slane %v797, 4
    %v800 = vshll.u32 %v106, 16
    %v802 = vrot.slane %v800, 5
    %v803 = vor.u32 %v799, %v802
    %v804 = vrot.slane %v803, 4
    %v806 = vshll.u32 %v107, 16
    %v808 = vrot.slane %v806, 5
    %v809 = vsel %vm123, %v804, %v808
    %v810 = vshrl.u32 %v107, 16
    %v812 = vrot.slane %v810, 4
    %v813 = vor.u32 %v812, %v808
    %v814 = vrot.slane %v813, 4
    %v816 = vshll.u32 %v108, 16
    %v818 = vrot.slane %v816, 5
    %v819 = vsel %vm123, %v814, %v818
    %v821 = vshrl.u32 %v109, 16
    %v823 = vrot.slane %v821, 4
    %v824 = vshll.u32 %v109, 16
    %v826 = vrot.slane %v824, 5
    %v827 = vor.u32 %v823, %v826
    %v828 = vrot.slane %v827, 4
    %v830 = vshll.u32 %v110, 16
    %v832 = vrot.slane %v830, 5
    %v833 = vsel %vm123, %v828, %v832
    %v834 = vshrl.u32 %v110, 16
    %v836 = vrot.slane %v834, 4
    %v837 = vor.u32 %v836, %v832
    %v838 = vrot.slane %v837, 4
    %v840 = vshll.u32 %v111, 16
    %v842 = vrot.slane %v840, 5
    %v843 = vsel %vm123, %v838, %v842
    %v845 = vshrl.u32 %v112, 16
    %v847 = vrot.slane %v845, 4
    %v848 = vshll.u32 %v112, 16
    %v850 = vrot.slane %v848, 5
    %v851 = vor.u32 %v847, %v850
    %v852 = vrot.slane %v851, 4
    %v854 = vshll.u32 %v113, 16
    %v856 = vrot.slane %v854, 5
    %v857 = vsel %vm123, %v852, %v856
    %v858 = vshrl.u32 %v113, 16
    %v860 = vrot.slane %v858, 4
    %v861 = vor.u32 %v860, %v856
    %v862 = vrot.slane %v861, 4
    %v864 = vshll.u32 %v114, 16
    %v866 = vrot.slane %v864, 5
    %v867 = vsel %vm123, %v862, %v866
    %v869 = vshrl.u32 %v115, 16
    %v871 = vrot.slane %v869, 4
    %v872 = vshll.u32 %v115, 16
    %v874 = vrot.slane %v872, 5
    %v875 = vor.u32 %v871, %v874
    %v876 = vrot.slane %v875, 4
    %v878 = vshll.u32 %v116, 16
    %v880 = vrot.slane %v878, 5
    %v881 = vsel %vm123, %v876, %v880
    %v882 = vshrl.u32 %v116, 16
    %v884 = vrot.slane %v882, 4
    %v885 = vor.u32 %v884, %v880
    %v886 = vrot.slane %v885, 4
    %v888 = vshll.u32 %v117, 16
    %v890 = vrot.slane %v888, 5
    %v891 = vsel %vm123, %v886, %v890
    %v893 = vshrl.u32 %v67, 16
    %v895 = vrot.slane %v893, 4
    %v896 = vshll.u32 %v67, 16
    %v898 = vrot.slane %v896, 5
    %v899 = vor.u32 %v895, %v898
    %v900 = vrot.slane %v899, 4
    %v902 = vshll.u32 %v68, 16
    %v904 = vrot.slane %v902, 5
    %v905 = vsel %vm123, %v900, %v904
    %v906 = vshrl.u32 %v68, 16
    %v908 = vrot.slane %v906, 4
    %v909 = vor.u32 %v908, %v904
    %v910 = vrot.slane %v909, 4
    %v912 = vshll.u32 %v69, 16
    %v914 = vrot.slane %v912, 5
    %v915 = vsel %vm123, %v910, %v914
    %v917 = vshrl.u32 %v118, 16
    %v919 = vrot.slane %v917, 4
    %v920 = vshll.u32 %v118, 16
    %v922 = vrot.slane %v920, 5
    %v923 = vor.u32 %v919, %v922
    %v924 = vrot.slane %v923, 4
    %v926 = vshll.u32 %v119, 16
    %v928 = vrot.slane %v926, 5
    %v929 = vsel %vm123, %v924, %v928
    %v930 = vshrl.u32 %v119, 16
    %v932 = vrot.slane %v930, 4
    %v933 = vor.u32 %v932, %v928
    %v934 = vrot.slane %v933, 4
    %v936 = vshll.u32 %v120, 16
    %v938 = vrot.slane %v936, 5
    %v939 = vsel %vm123, %v934, %v938
    %v1004 = vunpack.c.l.b16 %v19
    %v1005 = vunpack.c.l.b16 %v20
    %v1006 = vunpack.c.l.b16 %v22
    %v1007 = vunpack.c.l.b16 %v23
    %v1008 = vunpack.c.l.b16 %v25
    %v1009 = vunpack.c.l.b16 %v26
    %v1010 = vunpack.c.l.b16 %v28
    %v1011 = vunpack.c.l.b16 %v29
    %v1012 = vunpack.c.l.b16 %v31
    %v1013 = vunpack.c.l.b16 %v32
    %v1014 = vunpack.c.l.b16 %v34
    %v1015 = vunpack.c.l.b16 %v35
    %v1016 = vunpack.c.l.b16 %v37
    %v1017 = vunpack.c.l.b16 %v38
    %v1018 = vunpack.c.l.b16 %v40
    %v1019 = vunpack.c.l.b16 %v41
    %v1020 = vunpack.c.l.b16 %v43
    %v1021 = vunpack.c.l.b16 %v44
    %v1022 = vunpack.c.l.b16 %v46
    %v1023 = vunpack.c.l.b16 %v47
    %v1024 = vunpack.c.l.b16 %v49
    %v1025 = vunpack.c.l.b16 %v50
    %v1026 = vunpack.c.l.b16 %v52
    %v1027 = vunpack.c.l.b16 %v53
    %v1028 = vunpack.c.l.b16 %v55
    %v1029 = vunpack.c.l.b16 %v56
    %v1030 = vunpack.c.l.b16 %v58
    %v1031 = vunpack.c.l.b16 %v59
    %v1032 = vunpack.c.l.b16 %v61
    %v1033 = vunpack.c.l.b16 %v62
    %v1034 = vunpack.c.l.b16 %v64
    %v1035 = vunpack.c.l.b16 %v65
    %v1036 = vunpack.c.l.b16 %v70
    %v1037 = vunpack.c.l.b16 %v71
    %v1038 = vunpack.c.l.b16 %v73
    %v1039 = vunpack.c.l.b16 %v74
    %v1040 = vunpack.c.l.b16 %v76
    %v1041 = vunpack.c.l.b16 %v77
    %v1042 = vunpack.c.l.b16 %v79
    %v1043 = vunpack.c.l.b16 %v80
    %v1044 = vunpack.c.l.b16 %v82
    %v1045 = vunpack.c.l.b16 %v83
    %v1046 = vunpack.c.l.b16 %v85
    %v1047 = vunpack.c.l.b16 %v86
    %v1048 = vunpack.c.l.b16 %v88
    %v1049 = vunpack.c.l.b16 %v89
    %v1050 = vunpack.c.l.b16 %v91
    %v1051 = vunpack.c.l.b16 %v92
    %v1052 = vunpack.c.l.b16 %v94
    %v1053 = vunpack.c.l.b16 %v95
    %v1054 = vunpack.c.l.b16 %v97
    %v1055 = vunpack.c.l.b16 %v98
    %v1056 = vunpack.c.l.b16 %v100
    %v1057 = vunpack.c.l.b16 %v101
    %v1058 = vunpack.c.l.b16 %v103
    %v1059 = vunpack.c.l.b16 %v104
    %v1060 = vunpack.c.l.b16 %v106
    %v1061 = vunpack.c.l.b16 %v107
    %v1062 = vunpack.c.l.b16 %v109
    %v1063 = vunpack.c.l.b16 %v110
    %v1064 = vunpack.c.l.b16 %v112
    %v1065 = vunpack.c.l.b16 %v113
    %v1066 = vunpack.c.l.b16 %v115
    %v1067 = vunpack.c.l.b16 %v116
    %v1068 = vpack.c.b16 %v1005, %v1004
    %v1069 = vpack.c.b16 %v1007, %v1006
    %v1070 = vpack.c.b16 %v1009, %v1008
    %v1071 = vpack.c.b16 %v1011, %v1010
    %v1072 = vpack.c.b16 %v1013, %v1012
    %v1073 = vpack.c.b16 %v1015, %v1014
    %v1074 = vpack.c.b16 %v1017, %v1016
    %v1075 = vpack.c.b16 %v1019, %v1018
    %v1076 = vpack.c.b16 %v1021, %v1020
    %v1077 = vpack.c.b16 %v1023, %v1022
    %v1078 = vpack.c.b16 %v1025, %v1024
    %v1079 = vpack.c.b16 %v1027, %v1026
    %v1080 = vpack.c.b16 %v1029, %v1028
    %v1081 = vpack.c.b16 %v1031, %v1030
    %v1082 = vpack.c.b16 %v1033, %v1032
    %v1083 = vpack.c.b16 %v1035, %v1034
    %v1084 = vpack.c.b16 %v1037, %v1036
    %v1085 = vpack.c.b16 %v1039, %v1038
    %v1086 = vpack.c.b16 %v1041, %v1040
    %v1087 = vpack.c.b16 %v1043, %v1042
    %v1088 = vpack.c.b16 %v1045, %v1044
    %v1089 = vpack.c.b16 %v1047, %v1046
    %v1090 = vpack.c.b16 %v1049, %v1048
    %v1091 = vpack.c.b16 %v1051, %v1050
    %v1092 = vpack.c.b16 %v1053, %v1052
    %v1093 = vpack.c.b16 %v1055, %v1054
    %v1094 = vpack.c.b16 %v1057, %v1056
    %v1095 = vpack.c.b16 %v1059, %v1058
    %v1096 = vpack.c.b16 %v1061, %v1060
    %v1097 = vpack.c.b16 %v1063, %v1062
    %v1098 = vpack.c.b16 %v1065, %v1064
    %v1099 = vpack.c.b16 %v1067, %v1066
    %v1100 = vunpack.c.l.b16 %v137
    %v1101 = vunpack.c.l.b16 %v147
    %v1102 = vunpack.c.l.b16 %v161
    %v1103 = vunpack.c.l.b16 %v171
    %v1104 = vunpack.c.l.b16 %v185
    %v1105 = vunpack.c.l.b16 %v195
    %v1106 = vunpack.c.l.b16 %v209
    %v1107 = vunpack.c.l.b16 %v219
    %v1108 = vunpack.c.l.b16 %v233
    %v1109 = vunpack.c.l.b16 %v243
    %v1110 = vunpack.c.l.b16 %v257
    %v1111 = vunpack.c.l.b16 %v267
    %v1112 = vunpack.c.l.b16 %v281
    %v1113 = vunpack.c.l.b16 %v291
    %v1114 = vunpack.c.l.b16 %v305
    %v1115 = vunpack.c.l.b16 %v315
    %v1116 = vunpack.c.l.b16 %v329
    %v1117 = vunpack.c.l.b16 %v339
    %v1118 = vunpack.c.l.b16 %v353
    %v1119 = vunpack.c.l.b16 %v363
    %v1120 = vunpack.c.l.b16 %v377
    %v1121 = vunpack.c.l.b16 %v387
    %v1122 = vunpack.c.l.b16 %v401
    %v1123 = vunpack.c.l.b16 %v411
    %v1124 = vunpack.c.l.b16 %v425
    %v1125 = vunpack.c.l.b16 %v435
    %v1126 = vunpack.c.l.b16 %v449
    %v1127 = vunpack.c.l.b16 %v459
    %v1128 = vunpack.c.l.b16 %v473
    %v1129 = vunpack.c.l.b16 %v483
    %v1130 = vunpack.c.l.b16 %v497
    %v1131 = vunpack.c.l.b16 %v507
    %v1132 = vunpack.c.l.b16 %v521
    %v1133 = vunpack.c.l.b16 %v531
    %v1134 = vunpack.c.l.b16 %v545
    %v1135 = vunpack.c.l.b16 %v555
    %v1136 = vunpack.c.l.b16 %v569
    %v1137 = vunpack.c.l.b16 %v579
    %v1138 = vunpack.c.l.b16 %v593
    %v1139 = vunpack.c.l.b16 %v603
    %v1140 = vunpack.c.l.b16 %v617
    %v1141 = vunpack.c.l.b16 %v627
    %v1142 = vunpack.c.l.b16 %v641
    %v1143 = vunpack.c.l.b16 %v651
    %v1144 = vunpack.c.l.b16 %v665
    %v1145 = vunpack.c.l.b16 %v675
    %v1146 = vunpack.c.l.b16 %v689
    %v1147 = vunpack.c.l.b16 %v699
    %v1148 = vunpack.c.l.b16 %v713
    %v1149 = vunpack.c.l.b16 %v723
    %v1150 = vunpack.c.l.b16 %v737
    %v1151 = vunpack.c.l.b16 %v747
    %v1152 = vunpack.c.l.b16 %v761
    %v1153 = vunpack.c.l.b16 %v771
    %v1154 = vunpack.c.l.b16 %v785
    %v1155 = vunpack.c.l.b16 %v795
    %v1156 = vunpack.c.l.b16 %v809
    %v1157 = vunpack.c.l.b16 %v819
    %v1158 = vunpack.c.l.b16 %v833
    %v1159 = vunpack.c.l.b16 %v843
    %v1160 = vunpack.c.l.b16 %v857
    %v1161 = vunpack.c.l.b16 %v867
    %v1162 = vunpack.c.l.b16 %v881
    %v1163 = vunpack.c.l.b16 %v891
    %v1164 = vpack.c.b16 %v1101, %v1100
    %v1165 = vpack.c.b16 %v1103, %v1102
    %v1166 = vpack.c.b16 %v1105, %v1104
    %v1167 = vpack.c.b16 %v1107, %v1106
    %v1168 = vpack.c.b16 %v1109, %v1108
    %v1169 = vpack.c.b16 %v1111, %v1110
    %v1170 = vpack.c.b16 %v1113, %v1112
    %v1171 = vpack.c.b16 %v1115, %v1114
    %v1172 = vpack.c.b16 %v1117, %v1116
    %v1173 = vpack.c.b16 %v1119, %v1118
    %v1174 = vpack.c.b16 %v1121, %v1120
    %v1175 = vpack.c.b16 %v1123, %v1122
    %v1176 = vpack.c.b16 %v1125, %v1124
    %v1177 = vpack.c.b16 %v1127, %v1126
    %v1178 = vpack.c.b16 %v1129, %v1128
    %v1179 = vpack.c.b16 %v1131, %v1130
    %v1180 = vpack.c.b16 %v1133, %v1132
    %v1181 = vpack.c.b16 %v1135, %v1134
    %v1182 = vpack.c.b16 %v1137, %v1136
    %v1183 = vpack.c.b16 %v1139, %v1138
    %v1184 = vpack.c.b16 %v1141, %v1140
    %v1185 = vpack.c.b16 %v1143, %v1142
    %v1186 = vpack.c.b16 %v1145, %v1144
    %v1187 = vpack.c.b16 %v1147, %v1146
    %v1188 = vpack.c.b16 %v1149, %v1148
    %v1189 = vpack.c.b16 %v1151, %v1150
    %v1190 = vpack.c.b16 %v1153, %v1152
    %v1191 = vpack.c.b16 %v1155, %v1154
    %v1192 = vpack.c.b16 %v1157, %v1156
    %v1193 = vpack.c.b16 %v1159, %v1158
    %v1194 = vpack.c.b16 %v1161, %v1160
    %v1195 = vpack.c.b16 %v1163, %v1162
    %1196 = vrot.lane.b32.xlu0 %v1164, 4
    %v1197 = vpop.permute.xlu0 %1196
    %1198 = vrot.lane.b32.xlu0 %v1165, 4
    %v1199 = vpop.permute.xlu0 %1198
    %1200 = vrot.lane.b32.xlu0 %v1166, 4
    %v1201 = vpop.permute.xlu0 %1200
    %1202 = vrot.lane.b32.xlu0 %v1167, 4
    %v1203 = vpop.permute.xlu0 %1202
    %1204 = vrot.lane.b32.xlu0 %v1168, 4
    %v1205 = vpop.permute.xlu0 %1204
    %1206 = vrot.lane.b32.xlu0 %v1169, 4
    %v1207 = vpop.permute.xlu0 %1206
    %1208 = vrot.lane.b32.xlu0 %v1170, 4
    %v1209 = vpop.permute.xlu0 %1208
    %1210 = vrot.lane.b32.xlu0 %v1171, 4
    %v1211 = vpop.permute.xlu0 %1210
    %1212 = vrot.lane.b32.xlu0 %v1172, 4
    %v1213 = vpop.permute.xlu0 %1212
    %1214 = vrot.lane.b32.xlu0 %v1173, 4
    %v1215 = vpop.permute.xlu0 %1214
    %1216 = vrot.lane.b32.xlu0 %v1174, 4
    %v1217 = vpop.permute.xlu0 %1216
    %1218 = vrot.lane.b32.xlu0 %v1175, 4
    %v1219 = vpop.permute.xlu0 %1218
    %1220 = vrot.lane.b32.xlu0 %v1176, 4
    %v1221 = vpop.permute.xlu0 %1220
    %1222 = vrot.lane.b32.xlu0 %v1177, 4
    %v1223 = vpop.permute.xlu0 %1222
    %1224 = vrot.lane.b32.xlu0 %v1178, 4
    %v1225 = vpop.permute.xlu0 %1224
    %1226 = vrot.lane.b32.xlu0 %v1179, 4
    %v1227 = vpop.permute.xlu0 %1226
    %1228 = vrot.lane.b32.xlu0 %v1180, 4
    %v1229 = vpop.permute.xlu0 %1228
    %1230 = vrot.lane.b32.xlu0 %v1181, 4
    %v1231 = vpop.permute.xlu0 %1230
    %1232 = vrot.lane.b32.xlu0 %v1182, 4
    %v1233 = vpop.permute.xlu0 %1232
    %1234 = vrot.lane.b32.xlu0 %v1183, 4
    %v1235 = vpop.permute.xlu0 %1234
    %1236 = vrot.lane.b32.xlu0 %v1184, 4
    %v1237 = vpop.permute.xlu0 %1236
    %1238 = vrot.lane.b32.xlu0 %v1185, 4
    %v1239 = vpop.permute.xlu0 %1238
    %1240 = vrot.lane.b32.xlu0 %v1186, 4
    %v1241 = vpop.permute.xlu0 %1240
    %1242 = vrot.lane.b32.xlu0 %v1187, 4
    %v1243 = vpop.permute.xlu0 %1242
    %1244 = vrot.lane.b32.xlu0 %v1188, 4
    %v1245 = vpop.permute.xlu0 %1244
    %1246 = vrot.lane.b32.xlu0 %v1189, 4
    %v1247 = vpop.permute.xlu0 %1246
    %1248 = vrot.lane.b32.xlu0 %v1190, 4
    %v1249 = vpop.permute.xlu0 %1248
    %1250 = vrot.lane.b32.xlu0 %v1191, 4
    %v1251 = vpop.permute.xlu0 %1250
    %1252 = vrot.lane.b32.xlu0 %v1192, 4
    %v1253 = vpop.permute.xlu0 %1252
    %1254 = vrot.lane.b32.xlu0 %v1193, 4
    %v1255 = vpop.permute.xlu0 %1254
    %1256 = vrot.lane.b32.xlu0 %v1194, 4
    %v1257 = vpop.permute.xlu0 %1256
    %1258 = vrot.lane.b32.xlu0 %v1195, 4
    %v1259 = vpop.permute.xlu0 %1258
    %v1264 = vunpack.c.l.b16 %v67
    %v1265 = vunpack.c.l.b16 %v68
    %v1266 = vunpack.c.l.b16 %v118
    %v1267 = vunpack.c.l.b16 %v119
    %v1268 = vpack.c.b16 %v1265, %v1264
    %v1269 = vpack.c.b16 %v1267, %v1266
    %1270 = vrot.lane.b32.xlu0 %v1069, 8
    %v1271 = vpop.permute.xlu0 %1270
    %1272 = vrot.lane.b32.xlu0 %v1070, 8
    %v1273 = vpop.permute.xlu0 %1272
    %1274 = vrot.lane.b32.xlu0 %v1071, 8
    %v1275 = vpop.permute.xlu0 %1274
    %1276 = vrot.lane.b32.xlu0 %v1072, 8
    %v1277 = vpop.permute.xlu0 %1276
    %1278 = vrot.lane.b32.xlu0 %v1073, 8
    %v1279 = vpop.permute.xlu0 %1278
    %1280 = vrot.lane.b32.xlu0 %v1074, 8
    %v1281 = vpop.permute.xlu0 %1280
    %1282 = vrot.lane.b32.xlu0 %v1075, 8
    %v1283 = vpop.permute.xlu0 %1282
    %1284 = vrot.lane.b32.xlu0 %v1076, 8
    %v1285 = vpop.permute.xlu0 %1284
    %1286 = vrot.lane.b32.xlu0 %v1077, 8
    %v1287 = vpop.permute.xlu0 %1286
    %1288 = vrot.lane.b32.xlu0 %v1078, 8
    %v1289 = vpop.permute.xlu0 %1288
    %1290 = vrot.lane.b32.xlu0 %v1079, 8
    %v1291 = vpop.permute.xlu0 %1290
    %1292 = vrot.lane.b32.xlu0 %v1080, 8
    %v1293 = vpop.permute.xlu0 %1292
    %1294 = vrot.lane.b32.xlu0 %v1081, 8
    %v1295 = vpop.permute.xlu0 %1294
    %1296 = vrot.lane.b32.xlu0 %v1082, 8
    %v1297 = vpop.permute.xlu0 %1296
    %1298 = vrot.lane.b32.xlu0 %v1083, 8
    %v1299 = vpop.permute.xlu0 %1298
    %1300 = vrot.lane.b32.xlu0 %v1268, 8
    %v1301 = vpop.permute.xlu0 %1300
    %1302 = vrot.lane.b32.xlu0 %v1085, 8
    %v1303 = vpop.permute.xlu0 %1302
    %1304 = vrot.lane.b32.xlu0 %v1086, 8
    %v1305 = vpop.permute.xlu0 %1304
    %1306 = vrot.lane.b32.xlu0 %v1087, 8
    %v1307 = vpop.permute.xlu0 %1306
    %1308 = vrot.lane.b32.xlu0 %v1088, 8
    %v1309 = vpop.permute.xlu0 %1308
    %1310 = vrot.lane.b32.xlu0 %v1089, 8
    %v1311 = vpop.permute.xlu0 %1310
    %1312 = vrot.lane.b32.xlu0 %v1090, 8
    %v1313 = vpop.permute.xlu0 %1312
    %1314 = vrot.lane.b32.xlu0 %v1091, 8
    %v1315 = vpop.permute.xlu0 %1314
    %1316 = vrot.lane.b32.xlu0 %v1092, 8
    %v1317 = vpop.permute.xlu0 %1316
    %1318 = vrot.lane.b32.xlu0 %v1093, 8
    %v1319 = vpop.permute.xlu0 %1318
    %1320 = vrot.lane.b32.xlu0 %v1094, 8
    %v1321 = vpop.permute.xlu0 %1320
    %1322 = vrot.lane.b32.xlu0 %v1095, 8
    %v1323 = vpop.permute.xlu0 %1322
    %1324 = vrot.lane.b32.xlu0 %v1096, 8
    %v1325 = vpop.permute.xlu0 %1324
    %1326 = vrot.lane.b32.xlu0 %v1097, 8
    %v1327 = vpop.permute.xlu0 %1326
    %1328 = vrot.lane.b32.xlu0 %v1098, 8
    %v1329 = vpop.permute.xlu0 %1328
    %1330 = vrot.lane.b32.xlu0 %v1099, 8
    %v1331 = vpop.permute.xlu0 %1330
    %1332 = vrot.lane.b32.xlu0 %v1269, 8
    %v1333 = vpop.permute.xlu0 %1332
    %v1334 = vunpack.c.l.b16 %v905
    %v1335 = vunpack.c.l.b16 %v915
    %v1336 = vunpack.c.l.b16 %v929
    %v1337 = vunpack.c.l.b16 %v939
    %v1338 = vpack.c.b16 %v1335, %v1334
    %v1339 = vpack.c.b16 %v1337, %v1336
    %1340 = vrot.lane.b32.xlu0 %v1165, 12
    %v1341 = vpop.permute.xlu0 %1340
    %1342 = vrot.lane.b32.xlu0 %v1166, 12
    %v1343 = vpop.permute.xlu0 %1342
    %1344 = vrot.lane.b32.xlu0 %v1167, 12
    %v1345 = vpop.permute.xlu0 %1344
    %1346 = vrot.lane.b32.xlu0 %v1168, 12
    %v1347 = vpop.permute.xlu0 %1346
    %1348 = vrot.lane.b32.xlu0 %v1169, 12
    %v1349 = vpop.permute.xlu0 %1348
    %1350 = vrot.lane.b32.xlu0 %v1170, 12
    %v1351 = vpop.permute.xlu0 %1350
    %1352 = vrot.lane.b32.xlu0 %v1171, 12
    %v1353 = vpop.permute.xlu0 %1352
    %1354 = vrot.lane.b32.xlu0 %v1172, 12
    %v1355 = vpop.permute.xlu0 %1354
    %1356 = vrot.lane.b32.xlu0 %v1173, 12
    %v1357 = vpop.permute.xlu0 %1356
    %1358 = vrot.lane.b32.xlu0 %v1174, 12
    %v1359 = vpop.permute.xlu0 %1358
    %1360 = vrot.lane.b32.xlu0 %v1175, 12
    %v1361 = vpop.permute.xlu0 %1360
    %1362 = vrot.lane.b32.xlu0 %v1176, 12
    %v1363 = vpop.permute.xlu0 %1362
    %1364 = vrot.lane.b32.xlu0 %v1177, 12
    %v1365 = vpop.permute.xlu0 %1364
    %1366 = vrot.lane.b32.xlu0 %v1178, 12
    %v1367 = vpop.permute.xlu0 %1366
    %1368 = vrot.lane.b32.xlu0 %v1179, 12
    %v1369 = vpop.permute.xlu0 %1368
    %1370 = vrot.lane.b32.xlu0 %v1338, 12
    %v1371 = vpop.permute.xlu0 %1370
    %1372 = vrot.lane.b32.xlu0 %v1181, 12
    %v1373 = vpop.permute.xlu0 %1372
    %1374 = vrot.lane.b32.xlu0 %v1182, 12
    %v1375 = vpop.permute.xlu0 %1374
    %1376 = vrot.lane.b32.xlu0 %v1183, 12
    %v1377 = vpop.permute.xlu0 %1376
    %1378 = vrot.lane.b32.xlu0 %v1184, 12
    %v1379 = vpop.permute.xlu0 %1378
    %1380 = vrot.lane.b32.xlu0 %v1185, 12
    %v1381 = vpop.permute.xlu0 %1380
    %1382 = vrot.lane.b32.xlu0 %v1186, 12
    %v1383 = vpop.permute.xlu0 %1382
    %1384 = vrot.lane.b32.xlu0 %v1187, 12
    %v1385 = vpop.permute.xlu0 %1384
    %1386 = vrot.lane.b32.xlu0 %v1188, 12
    %v1387 = vpop.permute.xlu0 %1386
    %1388 = vrot.lane.b32.xlu0 %v1189, 12
    %v1389 = vpop.permute.xlu0 %1388
    %1390 = vrot.lane.b32.xlu0 %v1190, 12
    %v1391 = vpop.permute.xlu0 %1390
    %1392 = vrot.lane.b32.xlu0 %v1191, 12
    %v1393 = vpop.permute.xlu0 %1392
    %1394 = vrot.lane.b32.xlu0 %v1192, 12
    %v1395 = vpop.permute.xlu0 %1394
    %1396 = vrot.lane.b32.xlu0 %v1193, 12
    %v1397 = vpop.permute.xlu0 %1396
    %1398 = vrot.lane.b32.xlu0 %v1194, 12
    %v1399 = vpop.permute.xlu0 %1398
    %1400 = vrot.lane.b32.xlu0 %v1195, 12
    %v1401 = vpop.permute.xlu0 %1400
    %1402 = vrot.lane.b32.xlu0 %v1339, 12
    %v1403 = vpop.permute.xlu0 %1402
    %vm1404 = vcmask 31744
    %v1407 = vsel %vm1404, %v1068, %v1197
    %v1410 = vsel %vm1404, %v1069, %v1199
    %v1413 = vsel %vm1404, %v1070, %v1201
    %v1416 = vsel %vm1404, %v1071, %v1203
    %v1419 = vsel %vm1404, %v1072, %v1205
    %v1422 = vsel %vm1404, %v1073, %v1207
    %v1425 = vsel %vm1404, %v1074, %v1209
    %v1428 = vsel %vm1404, %v1075, %v1211
    %v1431 = vsel %vm1404, %v1076, %v1213
    %v1434 = vsel %vm1404, %v1077, %v1215
    %v1437 = vsel %vm1404, %v1078, %v1217
    %v1440 = vsel %vm1404, %v1079, %v1219
    %v1443 = vsel %vm1404, %v1080, %v1221
    %v1446 = vsel %vm1404, %v1081, %v1223
    %v1449 = vsel %vm1404, %v1082, %v1225
    %v1452 = vsel %vm1404, %v1083, %v1227
    %v1455 = vsel %vm1404, %v1084, %v1229
    %v1458 = vsel %vm1404, %v1085, %v1231
    %v1461 = vsel %vm1404, %v1086, %v1233
    %v1464 = vsel %vm1404, %v1087, %v1235
    %v1467 = vsel %vm1404, %v1088, %v1237
    %v1470 = vsel %vm1404, %v1089, %v1239
    %v1473 = vsel %vm1404, %v1090, %v1241
    %v1476 = vsel %vm1404, %v1091, %v1243
    %v1479 = vsel %vm1404, %v1092, %v1245
    %v1482 = vsel %vm1404, %v1093, %v1247
    %v1485 = vsel %vm1404, %v1094, %v1249
    %v1488 = vsel %vm1404, %v1095, %v1251
    %v1491 = vsel %vm1404, %v1096, %v1253
    %v1494 = vsel %vm1404, %v1097, %v1255
    %v1497 = vsel %vm1404, %v1098, %v1257
    %v1500 = vsel %vm1404, %v1099, %v1259
    %vm1501 = vcmask 64512
    %v1503 = vsel %vm1501, %v1407, %v1271
    %v1505 = vsel %vm1501, %v1410, %v1273
    %v1507 = vsel %vm1501, %v1413, %v1275
    %v1509 = vsel %vm1501, %v1416, %v1277
    %v1511 = vsel %vm1501, %v1419, %v1279
    %v1513 = vsel %vm1501, %v1422, %v1281
    %v1515 = vsel %vm1501, %v1425, %v1283
    %v1517 = vsel %vm1501, %v1428, %v1285
    %v1519 = vsel %vm1501, %v1431, %v1287
    %v1521 = vsel %vm1501, %v1434, %v1289
    %v1523 = vsel %vm1501, %v1437, %v1291
    %v1525 = vsel %vm1501, %v1440, %v1293
    %v1527 = vsel %vm1501, %v1443, %v1295
    %v1529 = vsel %vm1501, %v1446, %v1297
    %v1531 = vsel %vm1501, %v1449, %v1299
    %v1533 = vsel %vm1501, %v1452, %v1301
    %v1535 = vsel %vm1501, %v1455, %v1303
    %v1537 = vsel %vm1501, %v1458, %v1305
    %v1539 = vsel %vm1501, %v1461, %v1307
    %v1541 = vsel %vm1501, %v1464, %v1309
    %v1543 = vsel %vm1501, %v1467, %v1311
    %v1545 = vsel %vm1501, %v1470, %v1313
    %v1547 = vsel %vm1501, %v1473, %v1315
    %v1549 = vsel %vm1501, %v1476, %v1317
    %v1551 = vsel %vm1501, %v1479, %v1319
    %v1553 = vsel %vm1501, %v1482, %v1321
    %v1555 = vsel %vm1501, %v1485, %v1323
    %v1557 = vsel %vm1501, %v1488, %v1325
    %v1559 = vsel %vm1501, %v1491, %v1327
    %v1561 = vsel %vm1501, %v1494, %v1329
    %v1563 = vsel %vm1501, %v1497, %v1331
    %v1565 = vsel %vm1501, %v1500, %v1333
    %vm1566 = vcmask 97280
    %v1568 = vsel %vm1566, %v1503, %v1341
    %v1570 = vsel %vm1566, %v1505, %v1343
    %v1572 = vsel %vm1566, %v1507, %v1345
    %v1574 = vsel %vm1566, %v1509, %v1347
    %v1576 = vsel %vm1566, %v1511, %v1349
    %v1578 = vsel %vm1566, %v1513, %v1351
    %v1580 = vsel %vm1566, %v1515, %v1353
    %v1582 = vsel %vm1566, %v1517, %v1355
    %v1584 = vsel %vm1566, %v1519, %v1357
    %v1586 = vsel %vm1566, %v1521, %v1359
    %v1588 = vsel %vm1566, %v1523, %v1361
    %v1590 = vsel %vm1566, %v1525, %v1363
    %v1592 = vsel %vm1566, %v1527, %v1365
    %v1594 = vsel %vm1566, %v1529, %v1367
    %v1596 = vsel %vm1566, %v1531, %v1369
    %v1598 = vsel %vm1566, %v1533, %v1371
    %v1600 = vsel %vm1566, %v1535, %v1373
    %v1602 = vsel %vm1566, %v1537, %v1375
    %v1604 = vsel %vm1566, %v1539, %v1377
    %v1606 = vsel %vm1566, %v1541, %v1379
    %v1608 = vsel %vm1566, %v1543, %v1381
    %v1610 = vsel %vm1566, %v1545, %v1383
    %v1612 = vsel %vm1566, %v1547, %v1385
    %v1614 = vsel %vm1566, %v1549, %v1387
    %v1616 = vsel %vm1566, %v1551, %v1389
    %v1618 = vsel %vm1566, %v1553, %v1391
    %v1620 = vsel %vm1566, %v1555, %v1393
    %v1622 = vsel %vm1566, %v1557, %v1395
    %v1624 = vsel %vm1566, %v1559, %v1397
    %v1626 = vsel %vm1566, %v1561, %v1399
    %v1628 = vsel %vm1566, %v1563, %v1401
    %v1630 = vsel %vm1566, %v1565, %v1403
    %v1631 = vld [vmem:[%s1] sm:$0xf]
    %v1632 = vld [vmem:[%s1 + $0x4] sm:$0xf]
    %v1633 = vld [vmem:[%s1 + $0x8] sm:$0xf]
    %v1634 = vld [vmem:[%s1 + $0xc] sm:$0xf]
    %v1635 = vld [vmem:[%s1 + $0x10] sm:$0xf]
    %v1636 = vld [vmem:[%s1 + $0x14] sm:$0xf]
    %v1637 = vld [vmem:[%s1 + $0x18] sm:$0xf]
    %v1638 = vld [vmem:[%s1 + $0x1c] sm:$0xf]
    %v1647 = vunpack.c.l.b16 %v1631
    %v1648 = vunpack.c.l.b16 %v1632
    %v1649 = vunpack.c.l.b16 %v1633
    %v1650 = vunpack.c.l.b16 %v1634
    %v1651 = vunpack.c.l.b16 %v1635
    %v1652 = vunpack.c.l.b16 %v1636
    %v1653 = vunpack.c.l.b16 %v1637
    %v1654 = vunpack.c.l.b16 %v1638
    %v1655 = vpack.c.b16 %v1648, %v1647
    %v1656 = vpack.c.b16 %v1650, %v1649
    %v1657 = vpack.c.b16 %v1652, %v1651
    %v1658 = vpack.c.b16 %v1654, %v1653
    %vm1659 = vcmask 130048
    %v1661 = vsel %vm1659, %v1655, 0
    %v1664 = vsel %vm1659, %v1656, 0
    %v1667 = vsel %vm1659, %v1657, 0
    %v1670 = vsel %vm1659, %v1658, 0
    %v1672 = vsel %vm1659, %v1568, 0
    %v1674 = vsel %vm1659, %v1570, 0
    %v1676 = vsel %vm1659, %v1572, 0
    %v1678 = vsel %vm1659, %v1574, 0
    %v1680 = vsel %vm1659, %v1576, 0
    %v1682 = vsel %vm1659, %v1578, 0
    %v1684 = vsel %vm1659, %v1580, 0
    %v1686 = vsel %vm1659, %v1582, 0
    %v1688 = vsel %vm1659, %v1584, 0
    %v1690 = vsel %vm1659, %v1586, 0
    %v1692 = vsel %vm1659, %v1588, 0
    %v1694 = vsel %vm1659, %v1590, 0
    %v1696 = vsel %vm1659, %v1592, 0
    %v1698 = vsel %vm1659, %v1594, 0
    %v1700 = vsel %vm1659, %v1596, 0
    %v1702 = vsel %vm1659, %v1598, 0
    %v1704 = vsel %vm1659, %v1600, 0
    %v1706 = vsel %vm1659, %v1602, 0
    %v1708 = vsel %vm1659, %v1604, 0
    %v1710 = vsel %vm1659, %v1606, 0
    %v1712 = vsel %vm1659, %v1608, 0
    %v1714 = vsel %vm1659, %v1610, 0
    %v1716 = vsel %vm1659, %v1612, 0
    %v1718 = vsel %vm1659, %v1614, 0
    %v1720 = vsel %vm1659, %v1616, 0
    %v1722 = vsel %vm1659, %v1618, 0
    %v1724 = vsel %vm1659, %v1620, 0
    %v1726 = vsel %vm1659, %v1622, 0
    %v1728 = vsel %vm1659, %v1624, 0
    %v1730 = vsel %vm1659, %v1626, 0
    %v1732 = vsel %vm1659, %v1628, 0
    %v1734 = vsel %vm1659, %v1630, 0
    %1736 = vmatprep.subr.bf16.mxu0 0
    %1737 = vmatpush1.bf16.xpose.msra.mxu0 %v1672
    %1738 = vmatprep.subr.bf16.mxu0 0
    %1739 = vmatpush1.bf16.xpose.msra.mxu0 %v1674
    %1740 = vmatprep.subr.bf16.mxu0 0
    %1741 = vmatpush1.bf16.xpose.msra.mxu0 %v1676
    %1742 = vmatprep.subr.bf16.mxu0 0
    %1743 = vmatpush1.bf16.xpose.msra.mxu0 %v1678
    %1744 = vmatprep.subr.bf16.mxu0 0
    %1745 = vmatpush1.bf16.xpose.msra.mxu0 %v1680
    %1746 = vmatprep.subr.bf16.mxu0 0
    %1747 = vmatpush1.bf16.xpose.msra.mxu0 %v1682
    %1748 = vmatprep.subr.bf16.mxu0 0
    %1749 = vmatpush1.bf16.xpose.msra.mxu0 %v1684
    %1750 = vmatprep.subr.bf16.mxu0 0
    %1751 = vmatpush1.bf16.xpose.msra.mxu0 %v1686
    %1752 = vmatprep.subr.bf16.mxu0 0
    %1753 = vmatpush1.bf16.xpose.msra.mxu0 %v1688
    %1754 = vmatprep.subr.bf16.mxu0 0
    %1755 = vmatpush1.bf16.xpose.msra.mxu0 %v1690
    %1756 = vmatprep.subr.bf16.mxu0 0
    %1757 = vmatpush1.bf16.xpose.msra.mxu0 %v1692
    %1758 = vmatprep.subr.bf16.mxu0 0
    %1759 = vmatpush1.bf16.xpose.msra.mxu0 %v1694
    %1760 = vmatprep.subr.bf16.mxu0 0
    %1761 = vmatpush1.bf16.xpose.msra.mxu0 %v1696
    %1762 = vmatprep.subr.bf16.mxu0 0
    %1763 = vmatpush1.bf16.xpose.msra.mxu0 %v1698
    %1764 = vmatprep.subr.bf16.mxu0 0
    %1765 = vmatpush1.bf16.xpose.msra.mxu0 %v1700
    %1766 = vmatprep.subr.bf16.mxu0 0
    %1767 = vmatpush1.bf16.xpose.msra.mxu0 %v1702
    %1768 = vmatprep.mubr.bf16.mxu0 0
    %1769 = vmatmul.mubr.bf16.gmra.mrb[0].mxu0 %v1661
    %v1770 = vpop.f32.mrb[0].mxu0
    %v1771 = vadd.f32 0.0, %v1770
    %v1772 = vpop.f32.mrb[0].mxu0
    %v1773 = vadd.f32 0.0, %v1772
    %v1774 = vpop.f32.mrb[0].mxu0
    %v1775 = vadd.f32 0.0, %v1774
    %v1776 = vpop.f32.mrb[0].mxu0
    %v1777 = vadd.f32 0.0, %v1776
    %1778 = vmatprep.mubr.bf16.mxu0 0
    %1779 = vmatmul.mubr.bf16.gmra.mrb[0].mxu0 %v1664
    %v1780 = vpop.f32.mrb[0].mxu0
    %v1781 = vadd.f32 0.0, %v1780
    %v1782 = vpop.f32.mrb[0].mxu0
    %v1783 = vadd.f32 0.0, %v1782
    %v1784 = vpop.f32.mrb[0].mxu0
    %v1785 = vadd.f32 0.0, %v1784
    %v1786 = vpop.f32.mrb[0].mxu0
    %v1787 = vadd.f32 0.0, %v1786
    %1788 = vmatprep.mubr.bf16.mxu0 0
    %1789 = vmatmul.mubr.bf16.gmra.mrb[0].mxu0 %v1667
    %v1790 = vpop.f32.mrb[0].mxu0
    %v1791 = vadd.f32 0.0, %v1790
    %v1792 = vpop.f32.mrb[0].mxu0
    %v1793 = vadd.f32 0.0, %v1792
    %v1794 = vpop.f32.mrb[0].mxu0
    %v1795 = vadd.f32 0.0, %v1794
    %v1796 = vpop.f32.mrb[0].mxu0
    %v1797 = vadd.f32 0.0, %v1796
    %1798 = vmatprep.mubr.bf16.mxu0 0
    %1799 = vmatmul.mubr.bf16.gmra.mrb[0].mxu0 %v1670
    %v1800 = vpop.f32.mrb[0].mxu0
    %v1801 = vadd.f32 0.0, %v1800
    %v1802 = vpop.f32.mrb[0].mxu0
    %v1803 = vadd.f32 0.0, %v1802
    %v1804 = vpop.f32.mrb[0].mxu0
    %v1805 = vadd.f32 0.0, %v1804
    %v1806 = vpop.f32.mrb[0].mxu0
    %v1807 = vadd.f32 0.0, %v1806
    %1808 = vdwg.mxu0
    %1809 = vmatprep.subr.bf16.mxu0 0
    %1810 = vmatpush1.bf16.xpose.msra.mxu0 %v1704
    %1811 = vmatprep.subr.bf16.mxu0 0
    %1812 = vmatpush1.bf16.xpose.msra.mxu0 %v1706
    %1813 = vmatprep.subr.bf16.mxu0 0
    %1814 = vmatpush1.bf16.xpose.msra.mxu0 %v1708
    %1815 = vmatprep.subr.bf16.mxu0 0
    %1816 = vmatpush1.bf16.xpose.msra.mxu0 %v1710
    %1817 = vmatprep.subr.bf16.mxu0 0
    %1818 = vmatpush1.bf16.xpose.msra.mxu0 %v1712
    %1819 = vmatprep.subr.bf16.mxu0 0
    %1820 = vmatpush1.bf16.xpose.msra.mxu0 %v1714
    %1821 = vmatprep.subr.bf16.mxu0 0
    %1822 = vmatpush1.bf16.xpose.msra.mxu0 %v1716
    %1823 = vmatprep.subr.bf16.mxu0 0
    %1824 = vmatpush1.bf16.xpose.msra.mxu0 %v1718
    %1825 = vmatprep.subr.bf16.mxu0 0
    %1826 = vmatpush1.bf16.xpose.msra.mxu0 %v1720
    %1827 = vmatprep.subr.bf16.mxu0 0
    %1828 = vmatpush1.bf16.xpose.msra.mxu0 %v1722
    %1829 = vmatprep.subr.bf16.mxu0 0
    %1830 = vmatpush1.bf16.xpose.msra.mxu0 %v1724
    %1831 = vmatprep.subr.bf16.mxu0 0
    %1832 = vmatpush1.bf16.xpose.msra.mxu0 %v1726
    %1833 = vmatprep.subr.bf16.mxu0 0
    %1834 = vmatpush1.bf16.xpose.msra.mxu0 %v1728
    %1835 = vmatprep.subr.bf16.mxu0 0
    %1836 = vmatpush1.bf16.xpose.msra.mxu0 %v1730
    %1837 = vmatprep.subr.bf16.mxu0 0
    %1838 = vmatpush1.bf16.xpose.msra.mxu0 %v1732
    %1839 = vmatprep.subr.bf16.mxu0 0
    %1840 = vmatpush1.bf16.xpose.msra.mxu0 %v1734
    %1841 = vmatprep.mubr.bf16.mxu0 0
    %1842 = vmatmul.mubr.bf16.gmra.mrb[0].mxu0 %v1661
    %v1843 = vpop.f32.mrb[0].mxu0
    %v1844 = vadd.f32 0.0, %v1843
    %v1845 = vpop.f32.mrb[0].mxu0
    %v1846 = vadd.f32 0.0, %v1845
    %v1847 = vpop.f32.mrb[0].mxu0
    %v1848 = vadd.f32 0.0, %v1847
    %v1849 = vpop.f32.mrb[0].mxu0
    %v1850 = vadd.f32 0.0, %v1849
    %1851 = vmatprep.mubr.bf16.mxu0 0
    %1852 = vmatmul.mubr.bf16.gmra.mrb[0].mxu0 %v1664
    %v1853 = vpop.f32.mrb[0].mxu0
    %v1854 = vadd.f32 0.0, %v1853
    %v1855 = vpop.f32.mrb[0].mxu0
    %v1856 = vadd.f32 0.0, %v1855
    %v1857 = vpop.f32.mrb[0].mxu0
    %v1858 = vadd.f32 0.0, %v1857
    %v1859 = vpop.f32.mrb[0].mxu0
    %v1860 = vadd.f32 0.0, %v1859
    %1861 = vmatprep.mubr.bf16.mxu0 0
    %1862 = vmatmul.mubr.bf16.gmra.mrb[0].mxu0 %v1667
    %v1863 = vpop.f32.mrb[0].mxu0
    %v1864 = vadd.f32 0.0, %v1863
    %v1865 = vpop.f32.mrb[0].mxu0
    %v1866 = vadd.f32 0.0, %v1865
    %v1867 = vpop.f32.mrb[0].mxu0
    %v1868 = vadd.f32 0.0, %v1867
    %v1869 = vpop.f32.mrb[0].mxu0
    %v1870 = vadd.f32 0.0, %v1869
    %1871 = vmatprep.mubr.bf16.mxu0 0
    %1872 = vmatmul.mubr.bf16.gmra.mrb[0].mxu0 %v1670
    %v1873 = vpop.f32.mrb[0].mxu0
    %v1874 = vadd.f32 0.0, %v1873
    %v1875 = vpop.f32.mrb[0].mxu0
    %v1876 = vadd.f32 0.0, %v1875
    %v1877 = vpop.f32.mrb[0].mxu0
    %v1878 = vadd.f32 0.0, %v1877
    %v1879 = vpop.f32.mrb[0].mxu0
    %v1880 = vadd.f32 0.0, %v1879
    %1881 = vdwg.mxu0
    %v1882 = vadd.f32 %v1771, %v1773
    %v1883 = vadd.f32 %v1882, %v1844
    %v1884 = vadd.f32 %v1883, %v1846
    %1885 = vadd.xlane.f32.xlu0 %v1884
    %v1886 = vpop.xlane.xlu0 %1885
    %v1887 = vadd.f32 %v1775, %v1777
    %v1888 = vadd.f32 %v1887, %v1848
    %v1889 = vadd.f32 %v1888, %v1850
    %1890 = vadd.xlane.f32.xlu0 %v1889
    %v1891 = vpop.xlane.xlu0 %1890
    %v1892 = vadd.f32 %v1781, %v1783
    %v1893 = vadd.f32 %v1892, %v1854
    %v1894 = vadd.f32 %v1893, %v1856
    %1895 = vadd.xlane.f32.xlu0 %v1894
    %v1896 = vpop.xlane.xlu0 %1895
    %v1897 = vadd.f32 %v1785, %v1787
    %v1898 = vadd.f32 %v1897, %v1858
    %v1899 = vadd.f32 %v1898, %v1860
    %1900 = vadd.xlane.f32.xlu0 %v1899
    %v1901 = vpop.xlane.xlu0 %1900
    %v1902 = vadd.f32 %v1791, %v1793
    %v1903 = vadd.f32 %v1902, %v1864
    %v1904 = vadd.f32 %v1903, %v1866
    %1905 = vadd.xlane.f32.xlu0 %v1904
    %v1906 = vpop.xlane.xlu0 %1905
    %v1907 = vadd.f32 %v1795, %v1797
    %v1908 = vadd.f32 %v1907, %v1868
    %v1909 = vadd.f32 %v1908, %v1870
    %1910 = vadd.xlane.f32.xlu0 %v1909
    %v1911 = vpop.xlane.xlu0 %1910
    %v1912 = vadd.f32 %v1801, %v1803
    %v1913 = vadd.f32 %v1912, %v1874
    %v1914 = vadd.f32 %v1913, %v1876
    %1915 = vadd.xlane.f32.xlu0 %v1914
    %v1916 = vpop.xlane.xlu0 %1915
    %v1917 = vadd.f32 %v1805, %v1807
    %v1918 = vadd.f32 %v1917, %v1878
    %v1919 = vadd.f32 %v1918, %v1880
    %1920 = vadd.xlane.f32.xlu0 %v1919
    %v1921 = vpop.xlane.xlu0 %1920
    %v1922 = vadd.f32 %v1886, %v1896
    %v1923 = vadd.f32 %v1922, %v1906
    %v1924 = vadd.f32 %v1923, %v1916
    %v1925 = vadd.f32 %v1891, %v1901
    %v1926 = vadd.f32 %v1925, %v1911
    %v1927 = vadd.f32 %v1926, %v1921
    %v1928 = vmul.f32 %v1771, %v1771
    %v1929 = vmul.f32 %v1773, %v1773
    %v1930 = vmul.f32 %v1844, %v1844
    %v1931 = vmul.f32 %v1846, %v1846
    %v1932 = vmul.f32 %v1775, %v1775
    %v1933 = vmul.f32 %v1777, %v1777
    %v1934 = vmul.f32 %v1848, %v1848
    %v1935 = vmul.f32 %v1850, %v1850
    %v1936 = vmul.f32 %v1781, %v1781
    %v1937 = vmul.f32 %v1783, %v1783
    %v1938 = vmul.f32 %v1854, %v1854
    %v1939 = vmul.f32 %v1856, %v1856
    %v1940 = vmul.f32 %v1785, %v1785
    %v1941 = vmul.f32 %v1787, %v1787
    %v1942 = vmul.f32 %v1858, %v1858
    %v1943 = vmul.f32 %v1860, %v1860
    %v1944 = vmul.f32 %v1791, %v1791
    %v1945 = vmul.f32 %v1793, %v1793
    %v1946 = vmul.f32 %v1864, %v1864
    %v1947 = vmul.f32 %v1866, %v1866
    %v1948 = vmul.f32 %v1795, %v1795
    %v1949 = vmul.f32 %v1797, %v1797
    %v1950 = vmul.f32 %v1868, %v1868
    %v1951 = vmul.f32 %v1870, %v1870
    %v1952 = vmul.f32 %v1801, %v1801
    %v1953 = vmul.f32 %v1803, %v1803
    %v1954 = vmul.f32 %v1874, %v1874
    %v1955 = vmul.f32 %v1876, %v1876
    %v1956 = vmul.f32 %v1805, %v1805
    %v1957 = vmul.f32 %v1807, %v1807
    %v1958 = vmul.f32 %v1878, %v1878
    %v1959 = vmul.f32 %v1880, %v1880
    %v1960 = vadd.f32 %v1928, %v1929
    %v1961 = vadd.f32 %v1960, %v1930
    %v1962 = vadd.f32 %v1961, %v1931
    %1963 = vadd.xlane.f32.xlu0 %v1962
    %v1964 = vpop.xlane.xlu0 %1963
    %v1965 = vadd.f32 %v1932, %v1933
    %v1966 = vadd.f32 %v1965, %v1934
    %v1967 = vadd.f32 %v1966, %v1935
    %1968 = vadd.xlane.f32.xlu0 %v1967
    %v1969 = vpop.xlane.xlu0 %1968
    %v1970 = vadd.f32 %v1936, %v1937
    %v1971 = vadd.f32 %v1970, %v1938
    %v1972 = vadd.f32 %v1971, %v1939
    %1973 = vadd.xlane.f32.xlu0 %v1972
    %v1974 = vpop.xlane.xlu0 %1973
    %v1975 = vadd.f32 %v1940, %v1941
    %v1976 = vadd.f32 %v1975, %v1942
    %v1977 = vadd.f32 %v1976, %v1943
    %1978 = vadd.xlane.f32.xlu0 %v1977
    %v1979 = vpop.xlane.xlu0 %1978
    %v1980 = vadd.f32 %v1944, %v1945
    %v1981 = vadd.f32 %v1980, %v1946
    %v1982 = vadd.f32 %v1981, %v1947
    %1983 = vadd.xlane.f32.xlu0 %v1982
    %v1984 = vpop.xlane.xlu0 %1983
    %v1985 = vadd.f32 %v1948, %v1949
    %v1986 = vadd.f32 %v1985, %v1950
    %v1987 = vadd.f32 %v1986, %v1951
    %1988 = vadd.xlane.f32.xlu0 %v1987
    %v1989 = vpop.xlane.xlu0 %1988
    %v1990 = vadd.f32 %v1952, %v1953
    %v1991 = vadd.f32 %v1990, %v1954
    %v1992 = vadd.f32 %v1991, %v1955
    %1993 = vadd.xlane.f32.xlu0 %v1992
    %v1994 = vpop.xlane.xlu0 %1993
    %v1995 = vadd.f32 %v1956, %v1957
    %v1996 = vadd.f32 %v1995, %v1958
    %v1997 = vadd.f32 %v1996, %v1959
    %1998 = vadd.xlane.f32.xlu0 %v1997
    %v1999 = vpop.xlane.xlu0 %1998
    %v2000 = vadd.f32 %v1964, %v1974
    %v2001 = vadd.f32 %v2000, %v1984
    %v2002 = vadd.f32 %v2001, %v1994
    %v2003 = vadd.f32 %v1969, %v1979
    %v2004 = vadd.f32 %v2003, %v1989
    %v2005 = vadd.f32 %v2004, %v1999
    %v2006 = vmul.f32 %v1924, 0.00048828125
    %v2007 = vmul.f32 %v1927, 0.00048828125
    %v2008 = vmul.f32 %v2002, 0.00048828125
    %v2009 = vmul.f32 %v2005, 0.00048828125
    %v2010 = vmul.f32 %v2006, %v2006
    %v2011 = vmul.f32 %v2007, %v2007
    %v2012 = vsub.f32 %v2008, %v2010
    %v2013 = vsub.f32 %v2009, %v2011
    %v2014 = vld [vmem:[%s2] sm:$0xff]
    %v2015 = vld [vmem:[%s2 + $0x8] sm:$0xff]
    %v2016 = vadd.f32 %v2012, 1e-05
    %v2017 = vadd.f32 %v2013, 1e-05
    %v2018 = vrsqrt.pop %v2016
    %v2019 = vrsqrt.pop %v2017
    %v2020 = vmul.f32 %v2014, %v2018
    %v2021 = vmul.f32 %v2015, %v2019
    %v2022 = vld [vmem:[%s3] sm:$0xff]
    %v2023 = vld [vmem:[%s3 + $0x8] sm:$0xff]
    %v2024 = vmul.f32 %v2006, %v2020
    %v2025 = vmul.f32 %v2007, %v2021
    %v2026 = vsub.f32 %v2022, %v2024
    %v2027 = vsub.f32 %v2023, %v2025
    %2029 = vset.pattern.permute.xlu0 0
    %2030 = vperm.xlu0 %2029, %v2020
    %v2031 = vpop.permute.xlu0 %2030
    %2034 = vset.pattern.permute.xlu0 0
    %2035 = vperm.xlu0 %2034, %v2021
    %v2036 = vpop.permute.xlu0 %2035
    %v2038 = vmul.f32 %v1771, %v2031
    %v2039 = vmul.f32 %v1773, %v2031
    %v2040 = vmul.f32 %v1844, %v2031
    %v2041 = vmul.f32 %v1846, %v2031
    %v2042 = vmul.f32 %v1775, %v2036
    %v2043 = vmul.f32 %v1777, %v2036
    %v2044 = vmul.f32 %v1848, %v2036
    %v2045 = vmul.f32 %v1850, %v2036
    %v2046 = vmul.f32 %v1781, %v2031
    %v2047 = vmul.f32 %v1783, %v2031
    %v2048 = vmul.f32 %v1854, %v2031
    %v2049 = vmul.f32 %v1856, %v2031
    %v2050 = vmul.f32 %v1785, %v2036
    %v2051 = vmul.f32 %v1787, %v2036
    %v2052 = vmul.f32 %v1858, %v2036
    %v2053 = vmul.f32 %v1860, %v2036
    %v2054 = vmul.f32 %v1791, %v2031
    %v2055 = vmul.f32 %v1793, %v2031
    %v2056 = vmul.f32 %v1864, %v2031
    %v2057 = vmul.f32 %v1866, %v2031
    %v2058 = vmul.f32 %v1795, %v2036
    %v2059 = vmul.f32 %v1797, %v2036
    %v2060 = vmul.f32 %v1868, %v2036
    %v2061 = vmul.f32 %v1870, %v2036
    %v2062 = vmul.f32 %v1801, %v2031
    %v2063 = vmul.f32 %v1803, %v2031
    %v2064 = vmul.f32 %v1874, %v2031
    %v2065 = vmul.f32 %v1876, %v2031
    %v2066 = vmul.f32 %v1805, %v2036
    %v2067 = vmul.f32 %v1807, %v2036
    %v2068 = vmul.f32 %v1878, %v2036
    %v2069 = vmul.f32 %v1880, %v2036
    %2071 = vset.pattern.permute.xlu0 0
    %2072 = vperm.xlu0 %2071, %v2026
    %v2073 = vpop.permute.xlu0 %2072
    %2076 = vset.pattern.permute.xlu0 0
    %2077 = vperm.xlu0 %2076, %v2027
    %v2078 = vpop.permute.xlu0 %2077
    %v2080 = vadd.f32 %v2038, %v2073
    %v2081 = vadd.f32 %v2039, %v2073
    %v2082 = vadd.f32 %v2040, %v2073
    %v2083 = vadd.f32 %v2041, %v2073
    %v2084 = vadd.f32 %v2042, %v2078
    %v2085 = vadd.f32 %v2043, %v2078
    %v2086 = vadd.f32 %v2044, %v2078
    %v2087 = vadd.f32 %v2045, %v2078
    %v2088 = vadd.f32 %v2046, %v2073
    %v2089 = vadd.f32 %v2047, %v2073
    %v2090 = vadd.f32 %v2048, %v2073
    %v2091 = vadd.f32 %v2049, %v2073
    %v2092 = vadd.f32 %v2050, %v2078
    %v2093 = vadd.f32 %v2051, %v2078
    %v2094 = vadd.f32 %v2052, %v2078
    %v2095 = vadd.f32 %v2053, %v2078
    %v2096 = vadd.f32 %v2054, %v2073
    %v2097 = vadd.f32 %v2055, %v2073
    %v2098 = vadd.f32 %v2056, %v2073
    %v2099 = vadd.f32 %v2057, %v2073
    %v2100 = vadd.f32 %v2058, %v2078
    %v2101 = vadd.f32 %v2059, %v2078
    %v2102 = vadd.f32 %v2060, %v2078
    %v2103 = vadd.f32 %v2061, %v2078
    %v2104 = vadd.f32 %v2062, %v2073
    %v2105 = vadd.f32 %v2063, %v2073
    %v2106 = vadd.f32 %v2064, %v2073
    %v2107 = vadd.f32 %v2065, %v2073
    %v2108 = vadd.f32 %v2066, %v2078
    %v2109 = vadd.f32 %v2067, %v2078
    %v2110 = vadd.f32 %v2068, %v2078
    %v2111 = vadd.f32 %v2069, %v2078
    %v2112 = vmax.f32 %v2080, 0.0
    %v2113 = vmax.f32 %v2081, 0.0
    %v2114 = vmax.f32 %v2082, 0.0
    %v2115 = vmax.f32 %v2083, 0.0
    %v2116 = vmax.f32 %v2084, 0.0
    %v2117 = vmax.f32 %v2085, 0.0
    %v2118 = vmax.f32 %v2086, 0.0
    %v2119 = vmax.f32 %v2087, 0.0
    %v2120 = vmax.f32 %v2088, 0.0
    %v2121 = vmax.f32 %v2089, 0.0
    %v2122 = vmax.f32 %v2090, 0.0
    %v2123 = vmax.f32 %v2091, 0.0
    %v2124 = vmax.f32 %v2092, 0.0
    %v2125 = vmax.f32 %v2093, 0.0
    %v2126 = vmax.f32 %v2094, 0.0
    %v2127 = vmax.f32 %v2095, 0.0
    %v2128 = vmax.f32 %v2096, 0.0
    %v2129 = vmax.f32 %v2097, 0.0
    %v2130 = vmax.f32 %v2098, 0.0
    %v2131 = vmax.f32 %v2099, 0.0
    %v2132 = vmax.f32 %v2100, 0.0
    %v2133 = vmax.f32 %v2101, 0.0
    %v2134 = vmax.f32 %v2102, 0.0
    %v2135 = vmax.f32 %v2103, 0.0
    %v2136 = vmax.f32 %v2104, 0.0
    %v2137 = vmax.f32 %v2105, 0.0
    %v2138 = vmax.f32 %v2106, 0.0
    %v2139 = vmax.f32 %v2107, 0.0
    %v2140 = vmax.f32 %v2108, 0.0
    %v2141 = vmax.f32 %v2109, 0.0
    %v2142 = vmax.f32 %v2110, 0.0
    %v2143 = vmax.f32 %v2111, 0.0
    %2144 = vst [vmem:[#allocation2] sm:$0xff] %v2112
    %2145 = vst [vmem:[#allocation2 + $0x8] sm:$0xff] %v2113
    %2146 = vst [vmem:[#allocation2 + $0x10] sm:$0xff] %v2114
    %2147 = vst [vmem:[#allocation2 + $0x18] sm:$0xff] %v2115
    %2148 = vst [vmem:[#allocation2 + $0x20] sm:$0xff] %v2116
    %2149 = vst [vmem:[#allocation2 + $0x28] sm:$0xff] %v2117
    %2150 = vst [vmem:[#allocation2 + $0x30] sm:$0xff] %v2118
    %2151 = vst [vmem:[#allocation2 + $0x38] sm:$0xff] %v2119
    %2152 = vst [vmem:[#allocation2 + $0x40] sm:$0xff] %v2120
    %2153 = vst [vmem:[#allocation2 + $0x48] sm:$0xff] %v2121
    %2154 = vst [vmem:[#allocation2 + $0x50] sm:$0xff] %v2122
    %2155 = vst [vmem:[#allocation2 + $0x58] sm:$0xff] %v2123
    %2156 = vst [vmem:[#allocation2 + $0x60] sm:$0xff] %v2124
    %2157 = vst [vmem:[#allocation2 + $0x68] sm:$0xff] %v2125
    %2158 = vst [vmem:[#allocation2 + $0x70] sm:$0xff] %v2126
    %2159 = vst [vmem:[#allocation2 + $0x78] sm:$0xff] %v2127
    %2160 = vst [vmem:[#allocation2 + $0x80] sm:$0xff] %v2128
    %2161 = vst [vmem:[#allocation2 + $0x88] sm:$0xff] %v2129
    %2162 = vst [vmem:[#allocation2 + $0x90] sm:$0xff] %v2130
    %2163 = vst [vmem:[#allocation2 + $0x98] sm:$0xff] %v2131
    %2164 = vst [vmem:[#allocation2 + $0xa0] sm:$0xff] %v2132
    %2165 = vst [vmem:[#allocation2 + $0xa8] sm:$0xff] %v2133
    %2166 = vst [vmem:[#allocation2 + $0xb0] sm:$0xff] %v2134
    %2167 = vst [vmem:[#allocation2 + $0xb8] sm:$0xff] %v2135
    %2168 = vst [vmem:[#allocation2 + $0xc0] sm:$0xff] %v2136
    %2169 = vst [vmem:[#allocation2 + $0xc8] sm:$0xff] %v2137
    %2170 = vst [vmem:[#allocation2 + $0xd0] sm:$0xff] %v2138
    %2171 = vst [vmem:[#allocation2 + $0xd8] sm:$0xff] %v2139
    %2172 = vst [vmem:[#allocation2 + $0xe0] sm:$0xff] %v2140
    %2173 = vst [vmem:[#allocation2 + $0xe8] sm:$0xff] %v2141
    %2174 = vst [vmem:[#allocation2 + $0xf0] sm:$0xff] %v2142
    %2175 = vst [vmem:[#allocation2 + $0xf8] sm:$0xff] %v2143
    // Predicated region
    $region18: #{tpu_custom_call.1} parent=1 // pred_check
      _
    $region19: #{tpu_custom_call.1} parent=1 // pred_check_branch
      %2177 = sbr.rel (0) target = $region21
    $region20: #{tpu_custom_call.1} parent=1 // pred_region
      %s2179 = ssub.s32 4096, 4096
      %2180 = vsyncadd [#allocation3], %s2179
      %s2181 = sshll.u32 [#allocation2], 4
      %s2182 = int_to_ptr.vmem [resolvable:$true] %s2181
      %2187 = dma.vmem_to_hbm [thread:$0]  %s2182, 4096, %s4, [#allocation3], 512, 512, 32
    $region21: #{tpu_custom_call.1} parent=1 // pred_fallthru
      _
    // Predicated region
    $region22: #{tpu_custom_call.1} parent=1 // pred_check
      _
    $region23: #{tpu_custom_call.1} parent=1 // pred_check_branch
      %2189 = sbr.rel (0) target = $region25
    $region24: #{tpu_custom_call.1} parent=1 // pred_region
      %2190 = dma.done [#allocation3], 4096
    $region25: #{tpu_custom_call.1} parent=1 // pred_fallthru
      _
    %2191 = vsyncpa [#allocation3], 1

</llo_original>
